<compile_context>
chip_gen: v5e
topology: v5e:2x2
jax: 0.10.0
libtpu: 0.0.40
codegen_flags: <defaults>
</compile_context>

<pallas_src>
import jax
import jax.numpy as jnp
from jax.experimental import pallas as pl
from jax.experimental.pallas import tpu as pltpu


# ----------------------------------------------------------------------------
# Fused Discriminator kernel (all LSTM layers + FC + sigmoid in one call).
# Gate order follows PyTorch: i, f, g, o.
# ----------------------------------------------------------------------------
def _make_disc_kernel(num_layers, T, Bp, H):
    """Kernel ref order:
         x_ref (T,Bp,I) f32,
         per layer: wih (I_l,4H) bf16, whh (H,4H) bf16, b (1,4H) f32,
         fc_w (1,H) f32, fc_b (1,1) f32,
         o_ref (T,Bp) f32,
         scratch: xp (T,Bp,4H) f32, seq (T,Bp,H) f32, h (Bp,H) f32, c (Bp,H) f32
    """

    def kernel(x_ref, *rest):
        lw = rest[:3 * num_layers]
        fcw_ref = rest[3 * num_layers]
        fcb_ref = rest[3 * num_layers + 1]
        o_ref = rest[3 * num_layers + 2]
        xp_scr, seq_scr, h_scr, c_scr = rest[3 * num_layers + 3:]

        for layer in range(num_layers):           # static Python loop over layers
            wih_ref = lw[3 * layer + 0]
            whh_ref = lw[3 * layer + 1]
            b_ref = lw[3 * layer + 2]

            # Layer input: original x for layer 0, previous layer's h-sequence after.
            inp = x_ref[...] if layer == 0 else seq_scr[...]
            in_feat = inp.shape[-1]

            # Hoisted input projection for ALL timesteps: one MXU-friendly matmul.
            xproj = jnp.dot(
                inp.reshape(T * Bp, in_feat).astype(jnp.bfloat16),
                wih_ref[...],                       # (in_feat, 4H) bf16
                preferred_element_type=jnp.float32,
            ) + b_ref[...]                          # (T*Bp, 4H) f32 (bias = b_ih+b_hh)
            xp_scr[...] = xproj.reshape(T, Bp, 4 * H)

            h_scr[...] = jnp.zeros_like(h_scr)
            c_scr[...] = jnp.zeros_like(c_scr)

            whh = whh_ref[...]                      # (H, 4H) bf16, resident in VMEM

            def step(t, carry):
                # Only the recurrent matmul remains inside the time loop.
                gates = xp_scr[t] + jnp.dot(
                    h_scr[...].astype(jnp.bfloat16), whh,
                    preferred_element_type=jnp.float32)      # (Bp, 4H) f32
                i_g = jax.nn.sigmoid(gates[:, 0 * H:1 * H])
                f_g = jax.nn.sigmoid(gates[:, 1 * H:2 * H])
                g_g = jnp.tanh(gates[:, 2 * H:3 * H])
                o_g = jax.nn.sigmoid(gates[:, 3 * H:4 * H])
                c_new = f_g * c_scr[...] + i_g * g_g
                h_new = o_g * jnp.tanh(c_new)
                c_scr[...] = c_new
                h_scr[...] = h_new
                seq_scr[t] = h_new
                return carry

            jax.lax.fori_loop(0, T, step, 0, unroll=True)

        # Fused FC + sigmoid: VPU multiply + lane reduction (no N=1 MXU matmul,
        # no separate kernel launch, no HBM round trip of the (T,B,H) activations).
        h_all = seq_scr[...]                                       # (T, Bp, H) f32
        logits = jnp.sum(h_all * fcw_ref[...], axis=-1) + fcb_ref[...]   # (T, Bp)
        o_ref[...] = jax.nn.sigmoid(logits)

    return kernel


# ----------------------------------------------------------------------------
# Full Discriminator forward (wrapper: layout prep + one pallas_call).
# ----------------------------------------------------------------------------
@jax.jit
def discriminator_forward(x, lstm_params, fc_w, fc_b):
    # x: (B, T, input_size), batch_first like PyTorch.
    x = x.astype(jnp.float32)
    B, T, _ = x.shape
    num_layers = len(lstm_params)
    H = lstm_params[0][1].shape[1]                 # w_hh: (4H, H)
    Bp = max(8, ((B + 7) // 8) * 8)                # pad batch to sublane granule

    x_tbi = jnp.transpose(x, (1, 0, 2))            # time-major (T, B, I)
    x_tbi = jnp.pad(x_tbi, ((0, 0), (0, Bp - B), (0, 0)))

    args = [x_tbi]
    for (w_ih, w_hh, b_ih, b_hh) in lstm_params:
        args.append(jnp.transpose(w_ih).astype(jnp.bfloat16))            # (I_l, 4H)
        args.append(jnp.transpose(w_hh).astype(jnp.bfloat16))            # (H, 4H)
        args.append((b_ih + b_hh).reshape(1, 4 * H).astype(jnp.float32))  # (1, 4H)
    args.append(fc_w.reshape(1, H).astype(jnp.float32))                  # (1, H)
    args.append(fc_b.reshape(1, 1).astype(jnp.float32))                  # (1, 1)

    out_tb = pl.pallas_call(
        _make_disc_kernel(num_layers, T, Bp, H),
        out_shape=jax.ShapeDtypeStruct((T, Bp), jnp.float32),
        scratch_shapes=[
            pltpu.VMEM((T, Bp, 4 * H), jnp.float32),   # hoisted x-projection slab
            pltpu.VMEM((T, Bp, H), jnp.float32),       # per-layer h sequence
            pltpu.VMEM((Bp, H), jnp.float32),          # h state
            pltpu.VMEM((Bp, H), jnp.float32),          # c state
        ],
    )(*args)

    out = jnp.transpose(out_tb)[:B]                # (B, T), drop batch padding
    return out.reshape(B, T, 1)


# ----------------------------------------------------------------------------
# Pure-JAX f32 reference (lax.scan) for correctness checking.
# ----------------------------------------------------------------------------
def discriminator_ref(x, lstm_params, fc_w, fc_b):
    h_seq = x.astype(jnp.float32)
    for (w_ih, w_hh, b_ih, b_hh) in lstm_params:
        B, T, _ = h_seq.shape
        H = w_hh.shape[1]

        def step(carry, xt):
            h, c = carry
            gates = xt @ w_ih.T + h @ w_hh.T + b_ih + b_hh
            i, f, g, o = jnp.split(gates, 4, axis=-1)
            i = jax.nn.sigmoid(i)
            f = jax.nn.sigmoid(f)
            g = jnp.tanh(g)
            o = jax.nn.sigmoid(o)
            c = f * c + i * g
            h = o * jnp.tanh(c)
            return (h, c), h

        init = (jnp.zeros((B, H), jnp.float32), jnp.zeros((B, H), jnp.float32))
        _, ys = jax.lax.scan(step, init, jnp.transpose(h_seq, (1, 0, 2)))
        h_seq = jnp.transpose(ys, (1, 0, 2))
    return jax.nn.sigmoid(h_seq @ fc_w + fc_b.reshape(-1))


# ----------------------------------------------------------------------------
# Deterministic parameter init (PyTorch-style uniform(-1/sqrt(H), 1/sqrt(H))).
# ----------------------------------------------------------------------------
def init_params(key, input_size, hidden_size, num_layers):
    k = 1.0 / jnp.sqrt(jnp.float32(hidden_size))
    lstm_params = []
    for layer in range(num_layers):
        in_sz = input_size if layer == 0 else hidden_size
        key, k1, k2, k3, k4 = jax.random.split(key, 5)
        w_ih = jax.random.uniform(k1, (4 * hidden_size, in_sz), jnp.float32, -k, k)
        w_hh = jax.random.uniform(k2, (4 * hidden_size, hidden_size), jnp.float32, -k, k)
        b_ih = jax.random.uniform(k3, (4 * hidden_size,), jnp.float32, -k, k)
        b_hh = jax.random.uniform(k4, (4 * hidden_size,), jnp.float32, -k, k)
        lstm_params.append((w_ih, w_hh, b_ih, b_hh))
    key, k5, k6 = jax.random.split(key, 3)
    fc_w = jax.random.uniform(k5, (hidden_size, 1), jnp.float32, -k, k)
    fc_b = jax.random.uniform(k6, (1, 1), jnp.float32, -k, k)
    return tuple(lstm_params), fc_w, fc_b


if __name__ == "__main__":
    B, T = 2, 8
    input_size, hidden_size, num_layers = 16, 32, 2

    key = jax.random.PRNGKey(0)
    key, pkey, xkey = jax.random.split(key, 3)
    lstm_params, fc_w, fc_b = init_params(pkey, input_size, hidden_size, num_layers)

    x = jax.random.normal(xkey, (B, T, input_size), jnp.float32)

    out = jax.block_until_ready(discriminator_forward(x, lstm_params, fc_w, fc_b))
    ref = discriminator_ref(x, lstm_params, fc_w, fc_b)

    assert out.shape == (B, T, 1), out.shape
    # Kernel uses bf16 MXU operands (f32 accumulation); compare to f32 reference
    # with a correspondingly loose tolerance.
    assert jnp.allclose(out, ref, atol=2e-2, rtol=0.0), (
        float(jnp.max(jnp.abs(out - ref)))
    )
    print("KERNEL_OK")
</pallas_src>

<mosaic_0001>
module attributes {stable_mosaic.version = 11 : i64} {
  func.func @kernel(%arg0: memref<8x8x16xf32, #tpu.memory_space<vmem>>, %arg1: memref<16x128xbf16, #tpu.memory_space<vmem>>, %arg2: memref<32x128xbf16, #tpu.memory_space<vmem>>, %arg3: memref<1x128xf32, #tpu.memory_space<vmem>>, %arg4: memref<32x128xbf16, #tpu.memory_space<vmem>>, %arg5: memref<32x128xbf16, #tpu.memory_space<vmem>>, %arg6: memref<1x128xf32, #tpu.memory_space<vmem>>, %arg7: memref<1x32xf32, #tpu.memory_space<vmem>>, %arg8: memref<1x1xf32, #tpu.memory_space<vmem>>, %arg9: memref<8x8xf32, #tpu.memory_space<vmem>>, %arg10: memref<8x8x128xf32, #tpu.memory_space<vmem>>, %arg11: memref<8x8x32xf32, #tpu.memory_space<vmem>>, %arg12: memref<8x32xf32, #tpu.memory_space<vmem>>, %arg13: memref<8x32xf32, #tpu.memory_space<vmem>>) attributes {dimension_semantics = [], scalar_prefetch = 0 : i64, scratch_operands = 4 : i64, tpu.core_type = #tpu.core_type<tc>} {
    %c0 = arith.constant 0 : index
    %c0_0 = arith.constant 0 : index
    %c0_1 = arith.constant 0 : index
    %0 = vector.load %arg0[%c0, %c0_0, %c0_1] : memref<8x8x16xf32, #tpu.memory_space<vmem>>, vector<8x8x16xf32>
    %1 = vector.shape_cast %0 : vector<8x8x16xf32> to vector<64x16xf32>
    %2 = arith.truncf %1 : vector<64x16xf32> to vector<64x16xbf16>
    %c0_2 = arith.constant 0 : index
    %c0_3 = arith.constant 0 : index
    %3 = vector.load %arg1[%c0_2, %c0_3] : memref<16x128xbf16, #tpu.memory_space<vmem>>, vector<16x128xbf16>
    %cst = arith.constant dense<0.000000e+00> : vector<64x128xf32>
    %4 = tpu.matmul %2, %3, %cst {dimension_numbers = #tpu.dot_dimension_numbers<[1], [0], [0], [1], [0, 0, 1, 1], [], []>} : vector<64x16xbf16>, vector<16x128xbf16>, vector<64x128xf32> -> vector<64x128xf32>
    %c0_4 = arith.constant 0 : index
    %c0_5 = arith.constant 0 : index
    %5 = vector.load %arg3[%c0_4, %c0_5] : memref<1x128xf32, #tpu.memory_space<vmem>>, vector<1x128xf32>
    %6 = vector.broadcast %5 : vector<1x128xf32> to vector<64x128xf32>
    %7 = arith.addf %4, %6 : vector<64x128xf32>
    %8 = vector.shape_cast %7 : vector<64x128xf32> to vector<8x8x128xf32>
    %c0_6 = arith.constant 0 : index
    %c0_7 = arith.constant 0 : index
    %c0_8 = arith.constant 0 : index
    %9 = vector.load %arg10[%c0_6, %c0_7, %c0_8] : memref<8x8x128xf32, #tpu.memory_space<vmem>>, vector<8x8x128xf32>
    tpu.vector_store %arg10[%c0_6, %c0_7, %c0_8], %8 {strides = array<i32>} : memref<8x8x128xf32, #tpu.memory_space<vmem>>, vector<8x8x128xf32>,
    %cst_9 = arith.constant 0.000000e+00 : f32
    %10 = vector.broadcast %cst_9 : f32 to vector<8x32xf32>
    %c0_10 = arith.constant 0 : index
    %c0_11 = arith.constant 0 : index
    %11 = vector.load %arg12[%c0_10, %c0_11] : memref<8x32xf32, #tpu.memory_space<vmem>>, vector<8x32xf32>
    tpu.vector_store %arg12[%c0_10, %c0_11], %10 {strides = array<i32>} : memref<8x32xf32, #tpu.memory_space<vmem>>, vector<8x32xf32>,
    %cst_12 = arith.constant 0.000000e+00 : f32
    %12 = vector.broadcast %cst_12 : f32 to vector<8x32xf32>
    %c0_13 = arith.constant 0 : index
    %c0_14 = arith.constant 0 : index
    %13 = vector.load %arg13[%c0_13, %c0_14] : memref<8x32xf32, #tpu.memory_space<vmem>>, vector<8x32xf32>
    tpu.vector_store %arg13[%c0_13, %c0_14], %12 {strides = array<i32>} : memref<8x32xf32, #tpu.memory_space<vmem>>, vector<8x32xf32>,
    %c0_15 = arith.constant 0 : index
    %c0_16 = arith.constant 0 : index
    %14 = vector.load %arg2[%c0_15, %c0_16] : memref<32x128xbf16, #tpu.memory_space<vmem>>, vector<32x128xbf16>
    %c0_i32 = arith.constant 0 : i32
    %15 = arith.index_cast %c0_i32 : i32 to index
    %c0_17 = arith.constant 0 : index
    %c0_18 = arith.constant 0 : index
    %16 = vector.load %arg10[%15, %c0_17, %c0_18] : memref<8x8x128xf32, #tpu.memory_space<vmem>>, vector<1x8x128xf32>
    %17 = vector.shape_cast %16 : vector<1x8x128xf32> to vector<8x128xf32>
    %c0_19 = arith.constant 0 : index
    %c0_20 = arith.constant 0 : index
    %18 = vector.load %arg12[%c0_19, %c0_20] : memref<8x32xf32, #tpu.memory_space<vmem>>, vector<8x32xf32>
    %19 = arith.truncf %18 : vector<8x32xf32> to vector<8x32xbf16>
    %cst_21 = arith.constant dense<0.000000e+00> : vector<8x128xf32>
    %20 = tpu.matmul %19, %14, %cst_21 {dimension_numbers = #tpu.dot_dimension_numbers<[1], [0], [0], [1], [0, 0, 1, 1], [], []>} : vector<8x32xbf16>, vector<32x128xbf16>, vector<8x128xf32> -> vector<8x128xf32>
    %21 = arith.addf %17, %20 : vector<8x128xf32>
    %22 = vector.extract_strided_slice %21 {offsets = [0, 0], sizes = [8, 32], strides = [1, 1]} : vector<8x128xf32> to vector<8x32xf32>
    %23 = arith.negf %22 : vector<8x32xf32>
    %24 = math.exp %23 : vector<8x32xf32>
    %cst_22 = arith.constant 1.000000e+00 : f32
    %25 = vector.broadcast %cst_22 : f32 to vector<8x32xf32>
    %26 = arith.addf %25, %24 : vector<8x32xf32>
    %27 = arith.divf %25, %26 : vector<8x32xf32>
    %28 = vector.extract_strided_slice %21 {offsets = [0, 32], sizes = [8, 32], strides = [1, 1]} : vector<8x128xf32> to vector<8x32xf32>
    %29 = arith.negf %28 : vector<8x32xf32>
    %30 = math.exp %29 : vector<8x32xf32>
    %cst_23 = arith.constant 1.000000e+00 : f32
    %31 = vector.broadcast %cst_23 : f32 to vector<8x32xf32>
    %32 = arith.addf %31, %30 : vector<8x32xf32>
    %33 = arith.divf %31, %32 : vector<8x32xf32>
    %34 = vector.extract_strided_slice %21 {offsets = [0, 64], sizes = [8, 32], strides = [1, 1]} : vector<8x128xf32> to vector<8x32xf32>
    %35 = math.tanh %34 : vector<8x32xf32>
    %36 = vector.extract_strided_slice %21 {offsets = [0, 96], sizes = [8, 32], strides = [1, 1]} : vector<8x128xf32> to vector<8x32xf32>
    %37 = arith.negf %36 : vector<8x32xf32>
    %38 = math.exp %37 : vector<8x32xf32>
    %cst_24 = arith.constant 1.000000e+00 : f32
    %39 = vector.broadcast %cst_24 : f32 to vector<8x32xf32>
    %40 = arith.addf %39, %38 : vector<8x32xf32>
    %41 = arith.divf %39, %40 : vector<8x32xf32>
    %c0_25 = arith.constant 0 : index
    %c0_26 = arith.constant 0 : index
    %42 = vector.load %arg13[%c0_25, %c0_26] : memref<8x32xf32, #tpu.memory_space<vmem>>, vector<8x32xf32>
    %43 = arith.mulf %33, %42 : vector<8x32xf32>
    %44 = arith.mulf %27, %35 : vector<8x32xf32>
    %45 = arith.addf %43, %44 : vector<8x32xf32>
    %46 = math.tanh %45 : vector<8x32xf32>
    %47 = arith.mulf %41, %46 : vector<8x32xf32>
    %c0_27 = arith.constant 0 : index
    %c0_28 = arith.constant 0 : index
    %48 = vector.load %arg13[%c0_27, %c0_28] : memref<8x32xf32, #tpu.memory_space<vmem>>, vector<8x32xf32>
    tpu.vector_store %arg13[%c0_27, %c0_28], %45 {strides = array<i32>} : memref<8x32xf32, #tpu.memory_space<vmem>>, vector<8x32xf32>,
    %c0_29 = arith.constant 0 : index
    %c0_30 = arith.constant 0 : index
    %49 = vector.load %arg12[%c0_29, %c0_30] : memref<8x32xf32, #tpu.memory_space<vmem>>, vector<8x32xf32>
    tpu.vector_store %arg12[%c0_29, %c0_30], %47 {strides = array<i32>} : memref<8x32xf32, #tpu.memory_space<vmem>>, vector<8x32xf32>,
    %50 = arith.index_cast %c0_i32 : i32 to index
    %c0_31 = arith.constant 0 : index
    %c0_32 = arith.constant 0 : index
    %51 = vector.load %arg11[%50, %c0_31, %c0_32] : memref<8x8x32xf32, #tpu.memory_space<vmem>>, vector<1x8x32xf32>
    %52 = vector.shape_cast %51 : vector<1x8x32xf32> to vector<8x32xf32>
    %53 = vector.shape_cast %47 : vector<8x32xf32> to vector<1x8x32xf32>
    tpu.vector_store %arg11[%50, %c0_31, %c0_32], %53 {strides = array<i32>} : memref<8x8x32xf32, #tpu.memory_space<vmem>>, vector<1x8x32xf32>,
    %c1_i32 = arith.constant 1 : i32
    %54 = arith.index_cast %c1_i32 : i32 to index
    %c0_33 = arith.constant 0 : index
    %c0_34 = arith.constant 0 : index
    %55 = vector.load %arg10[%54, %c0_33, %c0_34] : memref<8x8x128xf32, #tpu.memory_space<vmem>>, vector<1x8x128xf32>
    %56 = vector.shape_cast %55 : vector<1x8x128xf32> to vector<8x128xf32>
    %c0_35 = arith.constant 0 : index
    %c0_36 = arith.constant 0 : index
    %57 = vector.load %arg12[%c0_35, %c0_36] : memref<8x32xf32, #tpu.memory_space<vmem>>, vector<8x32xf32>
    %58 = arith.truncf %57 : vector<8x32xf32> to vector<8x32xbf16>
    %cst_37 = arith.constant dense<0.000000e+00> : vector<8x128xf32>
    %59 = tpu.matmul %58, %14, %cst_37 {dimension_numbers = #tpu.dot_dimension_numbers<[1], [0], [0], [1], [0, 0, 1, 1], [], []>} : vector<8x32xbf16>, vector<32x128xbf16>, vector<8x128xf32> -> vector<8x128xf32>
    %60 = arith.addf %56, %59 : vector<8x128xf32>
    %61 = vector.extract_strided_slice %60 {offsets = [0, 0], sizes = [8, 32], strides = [1, 1]} : vector<8x128xf32> to vector<8x32xf32>
    %62 = arith.negf %61 : vector<8x32xf32>
    %63 = math.exp %62 : vector<8x32xf32>
    %cst_38 = arith.constant 1.000000e+00 : f32
    %64 = vector.broadcast %cst_38 : f32 to vector<8x32xf32>
    %65 = arith.addf %64, %63 : vector<8x32xf32>
    %66 = arith.divf %64, %65 : vector<8x32xf32>
    %67 = vector.extract_strided_slice %60 {offsets = [0, 32], sizes = [8, 32], strides = [1, 1]} : vector<8x128xf32> to vector<8x32xf32>
    %68 = arith.negf %67 : vector<8x32xf32>
    %69 = math.exp %68 : vector<8x32xf32>
    %cst_39 = arith.constant 1.000000e+00 : f32
    %70 = vector.broadcast %cst_39 : f32 to vector<8x32xf32>
    %71 = arith.addf %70, %69 : vector<8x32xf32>
    %72 = arith.divf %70, %71 : vector<8x32xf32>
    %73 = vector.extract_strided_slice %60 {offsets = [0, 64], sizes = [8, 32], strides = [1, 1]} : vector<8x128xf32> to vector<8x32xf32>
    %74 = math.tanh %73 : vector<8x32xf32>
    %75 = vector.extract_strided_slice %60 {offsets = [0, 96], sizes = [8, 32], strides = [1, 1]} : vector<8x128xf32> to vector<8x32xf32>
    %76 = arith.negf %75 : vector<8x32xf32>
    %77 = math.exp %76 : vector<8x32xf32>
    %cst_40 = arith.constant 1.000000e+00 : f32
    %78 = vector.broadcast %cst_40 : f32 to vector<8x32xf32>
    %79 = arith.addf %78, %77 : vector<8x32xf32>
    %80 = arith.divf %78, %79 : vector<8x32xf32>
    %c0_41 = arith.constant 0 : index
    %c0_42 = arith.constant 0 : index
    %81 = vector.load %arg13[%c0_41, %c0_42] : memref<8x32xf32, #tpu.memory_space<vmem>>, vector<8x32xf32>
    %82 = arith.mulf %72, %81 : vector<8x32xf32>
    %83 = arith.mulf %66, %74 : vector<8x32xf32>
    %84 = arith.addf %82, %83 : vector<8x32xf32>
    %85 = math.tanh %84 : vector<8x32xf32>
    %86 = arith.mulf %80, %85 : vector<8x32xf32>
    %c0_43 = arith.constant 0 : index
    %c0_44 = arith.constant 0 : index
    %87 = vector.load %arg13[%c0_43, %c0_44] : memref<8x32xf32, #tpu.memory_space<vmem>>, vector<8x32xf32>
    tpu.vector_store %arg13[%c0_43, %c0_44], %84 {strides = array<i32>} : memref<8x32xf32, #tpu.memory_space<vmem>>, vector<8x32xf32>,
    %c0_45 = arith.constant 0 : index
    %c0_46 = arith.constant 0 : index
    %88 = vector.load %arg12[%c0_45, %c0_46] : memref<8x32xf32, #tpu.memory_space<vmem>>, vector<8x32xf32>
    tpu.vector_store %arg12[%c0_45, %c0_46], %86 {strides = array<i32>} : memref<8x32xf32, #tpu.memory_space<vmem>>, vector<8x32xf32>,
    %89 = arith.index_cast %c1_i32 : i32 to index
    %c0_47 = arith.constant 0 : index
    %c0_48 = arith.constant 0 : index
    %90 = vector.load %arg11[%89, %c0_47, %c0_48] : memref<8x8x32xf32, #tpu.memory_space<vmem>>, vector<1x8x32xf32>
    %91 = vector.shape_cast %90 : vector<1x8x32xf32> to vector<8x32xf32>
    %92 = vector.shape_cast %86 : vector<8x32xf32> to vector<1x8x32xf32>
    tpu.vector_store %arg11[%89, %c0_47, %c0_48], %92 {strides = array<i32>} : memref<8x8x32xf32, #tpu.memory_space<vmem>>, vector<1x8x32xf32>,
    %c2_i32 = arith.constant 2 : i32
    %93 = arith.index_cast %c2_i32 : i32 to index
    %c0_49 = arith.constant 0 : index
    %c0_50 = arith.constant 0 : index
    %94 = vector.load %arg10[%93, %c0_49, %c0_50] : memref<8x8x128xf32, #tpu.memory_space<vmem>>, vector<1x8x128xf32>
    %95 = vector.shape_cast %94 : vector<1x8x128xf32> to vector<8x128xf32>
    %c0_51 = arith.constant 0 : index
    %c0_52 = arith.constant 0 : index
    %96 = vector.load %arg12[%c0_51, %c0_52] : memref<8x32xf32, #tpu.memory_space<vmem>>, vector<8x32xf32>
    %97 = arith.truncf %96 : vector<8x32xf32> to vector<8x32xbf16>
    %cst_53 = arith.constant dense<0.000000e+00> : vector<8x128xf32>
    %98 = tpu.matmul %97, %14, %cst_53 {dimension_numbers = #tpu.dot_dimension_numbers<[1], [0], [0], [1], [0, 0, 1, 1], [], []>} : vector<8x32xbf16>, vector<32x128xbf16>, vector<8x128xf32> -> vector<8x128xf32>
    %99 = arith.addf %95, %98 : vector<8x128xf32>
    %100 = vector.extract_strided_slice %99 {offsets = [0, 0], sizes = [8, 32], strides = [1, 1]} : vector<8x128xf32> to vector<8x32xf32>
    %101 = arith.negf %100 : vector<8x32xf32>
    %102 = math.exp %101 : vector<8x32xf32>
    %cst_54 = arith.constant 1.000000e+00 : f32
    %103 = vector.broadcast %cst_54 : f32 to vector<8x32xf32>
    %104 = arith.addf %103, %102 : vector<8x32xf32>
    %105 = arith.divf %103, %104 : vector<8x32xf32>
    %106 = vector.extract_strided_slice %99 {offsets = [0, 32], sizes = [8, 32], strides = [1, 1]} : vector<8x128xf32> to vector<8x32xf32>
    %107 = arith.negf %106 : vector<8x32xf32>
    %108 = math.exp %107 : vector<8x32xf32>
    %cst_55 = arith.constant 1.000000e+00 : f32
    %109 = vector.broadcast %cst_55 : f32 to vector<8x32xf32>
    %110 = arith.addf %109, %108 : vector<8x32xf32>
    %111 = arith.divf %109, %110 : vector<8x32xf32>
    %112 = vector.extract_strided_slice %99 {offsets = [0, 64], sizes = [8, 32], strides = [1, 1]} : vector<8x128xf32> to vector<8x32xf32>
    %113 = math.tanh %112 : vector<8x32xf32>
    %114 = vector.extract_strided_slice %99 {offsets = [0, 96], sizes = [8, 32], strides = [1, 1]} : vector<8x128xf32> to vector<8x32xf32>
    %115 = arith.negf %114 : vector<8x32xf32>
    %116 = math.exp %115 : vector<8x32xf32>
    %cst_56 = arith.constant 1.000000e+00 : f32
    %117 = vector.broadcast %cst_56 : f32 to vector<8x32xf32>
    %118 = arith.addf %117, %116 : vector<8x32xf32>
    %119 = arith.divf %117, %118 : vector<8x32xf32>
    %c0_57 = arith.constant 0 : index
    %c0_58 = arith.constant 0 : index
    %120 = vector.load %arg13[%c0_57, %c0_58] : memref<8x32xf32, #tpu.memory_space<vmem>>, vector<8x32xf32>
    %121 = arith.mulf %111, %120 : vector<8x32xf32>
    %122 = arith.mulf %105, %113 : vector<8x32xf32>
    %123 = arith.addf %121, %122 : vector<8x32xf32>
    %124 = math.tanh %123 : vector<8x32xf32>
    %125 = arith.mulf %119, %124 : vector<8x32xf32>
    %c0_59 = arith.constant 0 : index
    %c0_60 = arith.constant 0 : index
    %126 = vector.load %arg13[%c0_59, %c0_60] : memref<8x32xf32, #tpu.memory_space<vmem>>, vector<8x32xf32>
    tpu.vector_store %arg13[%c0_59, %c0_60], %123 {strides = array<i32>} : memref<8x32xf32, #tpu.memory_space<vmem>>, vector<8x32xf32>,
    %c0_61 = arith.constant 0 : index
    %c0_62 = arith.constant 0 : index
    %127 = vector.load %arg12[%c0_61, %c0_62] : memref<8x32xf32, #tpu.memory_space<vmem>>, vector<8x32xf32>
    tpu.vector_store %arg12[%c0_61, %c0_62], %125 {strides = array<i32>} : memref<8x32xf32, #tpu.memory_space<vmem>>, vector<8x32xf32>,
    %128 = arith.index_cast %c2_i32 : i32 to index
    %c0_63 = arith.constant 0 : index
    %c0_64 = arith.constant 0 : index
    %129 = vector.load %arg11[%128, %c0_63, %c0_64] : memref<8x8x32xf32, #tpu.memory_space<vmem>>, vector<1x8x32xf32>
    %130 = vector.shape_cast %129 : vector<1x8x32xf32> to vector<8x32xf32>
    %131 = vector.shape_cast %125 : vector<8x32xf32> to vector<1x8x32xf32>
    tpu.vector_store %arg11[%128, %c0_63, %c0_64], %131 {strides = array<i32>} : memref<8x8x32xf32, #tpu.memory_space<vmem>>, vector<1x8x32xf32>,
    %c3_i32 = arith.constant 3 : i32
    %132 = arith.index_cast %c3_i32 : i32 to index
    %c0_65 = arith.constant 0 : index
    %c0_66 = arith.constant 0 : index
    %133 = vector.load %arg10[%132, %c0_65, %c0_66] : memref<8x8x128xf32, #tpu.memory_space<vmem>>, vector<1x8x128xf32>
    %134 = vector.shape_cast %133 : vector<1x8x128xf32> to vector<8x128xf32>
    %c0_67 = arith.constant 0 : index
    %c0_68 = arith.constant 0 : index
    %135 = vector.load %arg12[%c0_67, %c0_68] : memref<8x32xf32, #tpu.memory_space<vmem>>, vector<8x32xf32>
    %136 = arith.truncf %135 : vector<8x32xf32> to vector<8x32xbf16>
    %cst_69 = arith.constant dense<0.000000e+00> : vector<8x128xf32>
    %137 = tpu.matmul %136, %14, %cst_69 {dimension_numbers = #tpu.dot_dimension_numbers<[1], [0], [0], [1], [0, 0, 1, 1], [], []>} : vector<8x32xbf16>, vector<32x128xbf16>, vector<8x128xf32> -> vector<8x128xf32>
    %138 = arith.addf %134, %137 : vector<8x128xf32>
    %139 = vector.extract_strided_slice %138 {offsets = [0, 0], sizes = [8, 32], strides = [1, 1]} : vector<8x128xf32> to vector<8x32xf32>
    %140 = arith.negf %139 : vector<8x32xf32>
    %141 = math.exp %140 : vector<8x32xf32>
    %cst_70 = arith.constant 1.000000e+00 : f32
    %142 = vector.broadcast %cst_70 : f32 to vector<8x32xf32>
    %143 = arith.addf %142, %141 : vector<8x32xf32>
    %144 = arith.divf %142, %143 : vector<8x32xf32>
    %145 = vector.extract_strided_slice %138 {offsets = [0, 32], sizes = [8, 32], strides = [1, 1]} : vector<8x128xf32> to vector<8x32xf32>
    %146 = arith.negf %145 : vector<8x32xf32>
    %147 = math.exp %146 : vector<8x32xf32>
    %cst_71 = arith.constant 1.000000e+00 : f32
    %148 = vector.broadcast %cst_71 : f32 to vector<8x32xf32>
    %149 = arith.addf %148, %147 : vector<8x32xf32>
    %150 = arith.divf %148, %149 : vector<8x32xf32>
    %151 = vector.extract_strided_slice %138 {offsets = [0, 64], sizes = [8, 32], strides = [1, 1]} : vector<8x128xf32> to vector<8x32xf32>
    %152 = math.tanh %151 : vector<8x32xf32>
    %153 = vector.extract_strided_slice %138 {offsets = [0, 96], sizes = [8, 32], strides = [1, 1]} : vector<8x128xf32> to vector<8x32xf32>
    %154 = arith.negf %153 : vector<8x32xf32>
    %155 = math.exp %154 : vector<8x32xf32>
    %cst_72 = arith.constant 1.000000e+00 : f32
    %156 = vector.broadcast %cst_72 : f32 to vector<8x32xf32>
    %157 = arith.addf %156, %155 : vector<8x32xf32>
    %158 = arith.divf %156, %157 : vector<8x32xf32>
    %c0_73 = arith.constant 0 : index
    %c0_74 = arith.constant 0 : index
    %159 = vector.load %arg13[%c0_73, %c0_74] : memref<8x32xf32, #tpu.memory_space<vmem>>, vector<8x32xf32>
    %160 = arith.mulf %150, %159 : vector<8x32xf32>
    %161 = arith.mulf %144, %152 : vector<8x32xf32>
    %162 = arith.addf %160, %161 : vector<8x32xf32>
    %163 = math.tanh %162 : vector<8x32xf32>
    %164 = arith.mulf %158, %163 : vector<8x32xf32>
    %c0_75 = arith.constant 0 : index
    %c0_76 = arith.constant 0 : index
    %165 = vector.load %arg13[%c0_75, %c0_76] : memref<8x32xf32, #tpu.memory_space<vmem>>, vector<8x32xf32>
    tpu.vector_store %arg13[%c0_75, %c0_76], %162 {strides = array<i32>} : memref<8x32xf32, #tpu.memory_space<vmem>>, vector<8x32xf32>,
    %c0_77 = arith.constant 0 : index
    %c0_78 = arith.constant 0 : index
    %166 = vector.load %arg12[%c0_77, %c0_78] : memref<8x32xf32, #tpu.memory_space<vmem>>, vector<8x32xf32>
    tpu.vector_store %arg12[%c0_77, %c0_78], %164 {strides = array<i32>} : memref<8x32xf32, #tpu.memory_space<vmem>>, vector<8x32xf32>,
    %167 = arith.index_cast %c3_i32 : i32 to index
    %c0_79 = arith.constant 0 : index
    %c0_80 = arith.constant 0 : index
    %168 = vector.load %arg11[%167, %c0_79, %c0_80] : memref<8x8x32xf32, #tpu.memory_space<vmem>>, vector<1x8x32xf32>
    %169 = vector.shape_cast %168 : vector<1x8x32xf32> to vector<8x32xf32>
    %170 = vector.shape_cast %164 : vector<8x32xf32> to vector<1x8x32xf32>
    tpu.vector_store %arg11[%167, %c0_79, %c0_80], %170 {strides = array<i32>} : memref<8x8x32xf32, #tpu.memory_space<vmem>>, vector<1x8x32xf32>,
    %c4_i32 = arith.constant 4 : i32
    %171 = arith.index_cast %c4_i32 : i32 to index
    %c0_81 = arith.constant 0 : index
    %c0_82 = arith.constant 0 : index
    %172 = vector.load %arg10[%171, %c0_81, %c0_82] : memref<8x8x128xf32, #tpu.memory_space<vmem>>, vector<1x8x128xf32>
    %173 = vector.shape_cast %172 : vector<1x8x128xf32> to vector<8x128xf32>
    %c0_83 = arith.constant 0 : index
    %c0_84 = arith.constant 0 : index
    %174 = vector.load %arg12[%c0_83, %c0_84] : memref<8x32xf32, #tpu.memory_space<vmem>>, vector<8x32xf32>
    %175 = arith.truncf %174 : vector<8x32xf32> to vector<8x32xbf16>
    %cst_85 = arith.constant dense<0.000000e+00> : vector<8x128xf32>
    %176 = tpu.matmul %175, %14, %cst_85 {dimension_numbers = #tpu.dot_dimension_numbers<[1], [0], [0], [1], [0, 0, 1, 1], [], []>} : vector<8x32xbf16>, vector<32x128xbf16>, vector<8x128xf32> -> vector<8x128xf32>
    %177 = arith.addf %173, %176 : vector<8x128xf32>
    %178 = vector.extract_strided_slice %177 {offsets = [0, 0], sizes = [8, 32], strides = [1, 1]} : vector<8x128xf32> to vector<8x32xf32>
    %179 = arith.negf %178 : vector<8x32xf32>
    %180 = math.exp %179 : vector<8x32xf32>
    %cst_86 = arith.constant 1.000000e+00 : f32
    %181 = vector.broadcast %cst_86 : f32 to vector<8x32xf32>
    %182 = arith.addf %181, %180 : vector<8x32xf32>
    %183 = arith.divf %181, %182 : vector<8x32xf32>
    %184 = vector.extract_strided_slice %177 {offsets = [0, 32], sizes = [8, 32], strides = [1, 1]} : vector<8x128xf32> to vector<8x32xf32>
    %185 = arith.negf %184 : vector<8x32xf32>
    %186 = math.exp %185 : vector<8x32xf32>
    %cst_87 = arith.constant 1.000000e+00 : f32
    %187 = vector.broadcast %cst_87 : f32 to vector<8x32xf32>
    %188 = arith.addf %187, %186 : vector<8x32xf32>
    %189 = arith.divf %187, %188 : vector<8x32xf32>
    %190 = vector.extract_strided_slice %177 {offsets = [0, 64], sizes = [8, 32], strides = [1, 1]} : vector<8x128xf32> to vector<8x32xf32>
    %191 = math.tanh %190 : vector<8x32xf32>
    %192 = vector.extract_strided_slice %177 {offsets = [0, 96], sizes = [8, 32], strides = [1, 1]} : vector<8x128xf32> to vector<8x32xf32>
    %193 = arith.negf %192 : vector<8x32xf32>
    %194 = math.exp %193 : vector<8x32xf32>
    %cst_88 = arith.constant 1.000000e+00 : f32
    %195 = vector.broadcast %cst_88 : f32 to vector<8x32xf32>
    %196 = arith.addf %195, %194 : vector<8x32xf32>
    %197 = arith.divf %195, %196 : vector<8x32xf32>
    %c0_89 = arith.constant 0 : index
    %c0_90 = arith.constant 0 : index
    %198 = vector.load %arg13[%c0_89, %c0_90] : memref<8x32xf32, #tpu.memory_space<vmem>>, vector<8x32xf32>
    %199 = arith.mulf %189, %198 : vector<8x32xf32>
    %200 = arith.mulf %183, %191 : vector<8x32xf32>
    %201 = arith.addf %199, %200 : vector<8x32xf32>
    %202 = math.tanh %201 : vector<8x32xf32>
    %203 = arith.mulf %197, %202 : vector<8x32xf32>
    %c0_91 = arith.constant 0 : index
    %c0_92 = arith.constant 0 : index
    %204 = vector.load %arg13[%c0_91, %c0_92] : memref<8x32xf32, #tpu.memory_space<vmem>>, vector<8x32xf32>
    tpu.vector_store %arg13[%c0_91, %c0_92], %201 {strides = array<i32>} : memref<8x32xf32, #tpu.memory_space<vmem>>, vector<8x32xf32>,
    %c0_93 = arith.constant 0 : index
    %c0_94 = arith.constant 0 : index
    %205 = vector.load %arg12[%c0_93, %c0_94] : memref<8x32xf32, #tpu.memory_space<vmem>>, vector<8x32xf32>
    tpu.vector_store %arg12[%c0_93, %c0_94], %203 {strides = array<i32>} : memref<8x32xf32, #tpu.memory_space<vmem>>, vector<8x32xf32>,
    %206 = arith.index_cast %c4_i32 : i32 to index
    %c0_95 = arith.constant 0 : index
    %c0_96 = arith.constant 0 : index
    %207 = vector.load %arg11[%206, %c0_95, %c0_96] : memref<8x8x32xf32, #tpu.memory_space<vmem>>, vector<1x8x32xf32>
    %208 = vector.shape_cast %207 : vector<1x8x32xf32> to vector<8x32xf32>
    %209 = vector.shape_cast %203 : vector<8x32xf32> to vector<1x8x32xf32>
    tpu.vector_store %arg11[%206, %c0_95, %c0_96], %209 {strides = array<i32>} : memref<8x8x32xf32, #tpu.memory_space<vmem>>, vector<1x8x32xf32>,
    %c5_i32 = arith.constant 5 : i32
    %210 = arith.index_cast %c5_i32 : i32 to index
    %c0_97 = arith.constant 0 : index
    %c0_98 = arith.constant 0 : index
    %211 = vector.load %arg10[%210, %c0_97, %c0_98] : memref<8x8x128xf32, #tpu.memory_space<vmem>>, vector<1x8x128xf32>
    %212 = vector.shape_cast %211 : vector<1x8x128xf32> to vector<8x128xf32>
    %c0_99 = arith.constant 0 : index
    %c0_100 = arith.constant 0 : index
    %213 = vector.load %arg12[%c0_99, %c0_100] : memref<8x32xf32, #tpu.memory_space<vmem>>, vector<8x32xf32>
    %214 = arith.truncf %213 : vector<8x32xf32> to vector<8x32xbf16>
    %cst_101 = arith.constant dense<0.000000e+00> : vector<8x128xf32>
    %215 = tpu.matmul %214, %14, %cst_101 {dimension_numbers = #tpu.dot_dimension_numbers<[1], [0], [0], [1], [0, 0, 1, 1], [], []>} : vector<8x32xbf16>, vector<32x128xbf16>, vector<8x128xf32> -> vector<8x128xf32>
    %216 = arith.addf %212, %215 : vector<8x128xf32>
    %217 = vector.extract_strided_slice %216 {offsets = [0, 0], sizes = [8, 32], strides = [1, 1]} : vector<8x128xf32> to vector<8x32xf32>
    %218 = arith.negf %217 : vector<8x32xf32>
    %219 = math.exp %218 : vector<8x32xf32>
    %cst_102 = arith.constant 1.000000e+00 : f32
    %220 = vector.broadcast %cst_102 : f32 to vector<8x32xf32>
    %221 = arith.addf %220, %219 : vector<8x32xf32>
    %222 = arith.divf %220, %221 : vector<8x32xf32>
    %223 = vector.extract_strided_slice %216 {offsets = [0, 32], sizes = [8, 32], strides = [1, 1]} : vector<8x128xf32> to vector<8x32xf32>
    %224 = arith.negf %223 : vector<8x32xf32>
    %225 = math.exp %224 : vector<8x32xf32>
    %cst_103 = arith.constant 1.000000e+00 : f32
    %226 = vector.broadcast %cst_103 : f32 to vector<8x32xf32>
    %227 = arith.addf %226, %225 : vector<8x32xf32>
    %228 = arith.divf %226, %227 : vector<8x32xf32>
    %229 = vector.extract_strided_slice %216 {offsets = [0, 64], sizes = [8, 32], strides = [1, 1]} : vector<8x128xf32> to vector<8x32xf32>
    %230 = math.tanh %229 : vector<8x32xf32>
    %231 = vector.extract_strided_slice %216 {offsets = [0, 96], sizes = [8, 32], strides = [1, 1]} : vector<8x128xf32> to vector<8x32xf32>
    %232 = arith.negf %231 : vector<8x32xf32>
    %233 = math.exp %232 : vector<8x32xf32>
    %cst_104 = arith.constant 1.000000e+00 : f32
    %234 = vector.broadcast %cst_104 : f32 to vector<8x32xf32>
    %235 = arith.addf %234, %233 : vector<8x32xf32>
    %236 = arith.divf %234, %235 : vector<8x32xf32>
    %c0_105 = arith.constant 0 : index
    %c0_106 = arith.constant 0 : index
    %237 = vector.load %arg13[%c0_105, %c0_106] : memref<8x32xf32, #tpu.memory_space<vmem>>, vector<8x32xf32>
    %238 = arith.mulf %228, %237 : vector<8x32xf32>
    %239 = arith.mulf %222, %230 : vector<8x32xf32>
    %240 = arith.addf %238, %239 : vector<8x32xf32>
    %241 = math.tanh %240 : vector<8x32xf32>
    %242 = arith.mulf %236, %241 : vector<8x32xf32>
    %c0_107 = arith.constant 0 : index
    %c0_108 = arith.constant 0 : index
    %243 = vector.load %arg13[%c0_107, %c0_108] : memref<8x32xf32, #tpu.memory_space<vmem>>, vector<8x32xf32>
    tpu.vector_store %arg13[%c0_107, %c0_108], %240 {strides = array<i32>} : memref<8x32xf32, #tpu.memory_space<vmem>>, vector<8x32xf32>,
    %c0_109 = arith.constant 0 : index
    %c0_110 = arith.constant 0 : index
    %244 = vector.load %arg12[%c0_109, %c0_110] : memref<8x32xf32, #tpu.memory_space<vmem>>, vector<8x32xf32>
    tpu.vector_store %arg12[%c0_109, %c0_110], %242 {strides = array<i32>} : memref<8x32xf32, #tpu.memory_space<vmem>>, vector<8x32xf32>,
    %245 = arith.index_cast %c5_i32 : i32 to index
    %c0_111 = arith.constant 0 : index
    %c0_112 = arith.constant 0 : index
    %246 = vector.load %arg11[%245, %c0_111, %c0_112] : memref<8x8x32xf32, #tpu.memory_space<vmem>>, vector<1x8x32xf32>
    %247 = vector.shape_cast %246 : vector<1x8x32xf32> to vector<8x32xf32>
    %248 = vector.shape_cast %242 : vector<8x32xf32> to vector<1x8x32xf32>
    tpu.vector_store %arg11[%245, %c0_111, %c0_112], %248 {strides = array<i32>} : memref<8x8x32xf32, #tpu.memory_space<vmem>>, vector<1x8x32xf32>,
    %c6_i32 = arith.constant 6 : i32
    %249 = arith.index_cast %c6_i32 : i32 to index
    %c0_113 = arith.constant 0 : index
    %c0_114 = arith.constant 0 : index
    %250 = vector.load %arg10[%249, %c0_113, %c0_114] : memref<8x8x128xf32, #tpu.memory_space<vmem>>, vector<1x8x128xf32>
    %251 = vector.shape_cast %250 : vector<1x8x128xf32> to vector<8x128xf32>
    %c0_115 = arith.constant 0 : index
    %c0_116 = arith.constant 0 : index
    %252 = vector.load %arg12[%c0_115, %c0_116] : memref<8x32xf32, #tpu.memory_space<vmem>>, vector<8x32xf32>
    %253 = arith.truncf %252 : vector<8x32xf32> to vector<8x32xbf16>
    %cst_117 = arith.constant dense<0.000000e+00> : vector<8x128xf32>
    %254 = tpu.matmul %253, %14, %cst_117 {dimension_numbers = #tpu.dot_dimension_numbers<[1], [0], [0], [1], [0, 0, 1, 1], [], []>} : vector<8x32xbf16>, vector<32x128xbf16>, vector<8x128xf32> -> vector<8x128xf32>
    %255 = arith.addf %251, %254 : vector<8x128xf32>
    %256 = vector.extract_strided_slice %255 {offsets = [0, 0], sizes = [8, 32], strides = [1, 1]} : vector<8x128xf32> to vector<8x32xf32>
    %257 = arith.negf %256 : vector<8x32xf32>
    %258 = math.exp %257 : vector<8x32xf32>
    %cst_118 = arith.constant 1.000000e+00 : f32
    %259 = vector.broadcast %cst_118 : f32 to vector<8x32xf32>
    %260 = arith.addf %259, %258 : vector<8x32xf32>
    %261 = arith.divf %259, %260 : vector<8x32xf32>
    %262 = vector.extract_strided_slice %255 {offsets = [0, 32], sizes = [8, 32], strides = [1, 1]} : vector<8x128xf32> to vector<8x32xf32>
    %263 = arith.negf %262 : vector<8x32xf32>
    %264 = math.exp %263 : vector<8x32xf32>
    %cst_119 = arith.constant 1.000000e+00 : f32
    %265 = vector.broadcast %cst_119 : f32 to vector<8x32xf32>
    %266 = arith.addf %265, %264 : vector<8x32xf32>
    %267 = arith.divf %265, %266 : vector<8x32xf32>
    %268 = vector.extract_strided_slice %255 {offsets = [0, 64], sizes = [8, 32], strides = [1, 1]} : vector<8x128xf32> to vector<8x32xf32>
    %269 = math.tanh %268 : vector<8x32xf32>
    %270 = vector.extract_strided_slice %255 {offsets = [0, 96], sizes = [8, 32], strides = [1, 1]} : vector<8x128xf32> to vector<8x32xf32>
    %271 = arith.negf %270 : vector<8x32xf32>
    %272 = math.exp %271 : vector<8x32xf32>
    %cst_120 = arith.constant 1.000000e+00 : f32
    %273 = vector.broadcast %cst_120 : f32 to vector<8x32xf32>
    %274 = arith.addf %273, %272 : vector<8x32xf32>
    %275 = arith.divf %273, %274 : vector<8x32xf32>
    %c0_121 = arith.constant 0 : index
    %c0_122 = arith.constant 0 : index
    %276 = vector.load %arg13[%c0_121, %c0_122] : memref<8x32xf32, #tpu.memory_space<vmem>>, vector<8x32xf32>
    %277 = arith.mulf %267, %276 : vector<8x32xf32>
    %278 = arith.mulf %261, %269 : vector<8x32xf32>
    %279 = arith.addf %277, %278 : vector<8x32xf32>
    %280 = math.tanh %279 : vector<8x32xf32>
    %281 = arith.mulf %275, %280 : vector<8x32xf32>
    %c0_123 = arith.constant 0 : index
    %c0_124 = arith.constant 0 : index
    %282 = vector.load %arg13[%c0_123, %c0_124] : memref<8x32xf32, #tpu.memory_space<vmem>>, vector<8x32xf32>
    tpu.vector_store %arg13[%c0_123, %c0_124], %279 {strides = array<i32>} : memref<8x32xf32, #tpu.memory_space<vmem>>, vector<8x32xf32>,
    %c0_125 = arith.constant 0 : index
    %c0_126 = arith.constant 0 : index
    %283 = vector.load %arg12[%c0_125, %c0_126] : memref<8x32xf32, #tpu.memory_space<vmem>>, vector<8x32xf32>
    tpu.vector_store %arg12[%c0_125, %c0_126], %281 {strides = array<i32>} : memref<8x32xf32, #tpu.memory_space<vmem>>, vector<8x32xf32>,
    %284 = arith.index_cast %c6_i32 : i32 to index
    %c0_127 = arith.constant 0 : index
    %c0_128 = arith.constant 0 : index
    %285 = vector.load %arg11[%284, %c0_127, %c0_128] : memref<8x8x32xf32, #tpu.memory_space<vmem>>, vector<1x8x32xf32>
    %286 = vector.shape_cast %285 : vector<1x8x32xf32> to vector<8x32xf32>
    %287 = vector.shape_cast %281 : vector<8x32xf32> to vector<1x8x32xf32>
    tpu.vector_store %arg11[%284, %c0_127, %c0_128], %287 {strides = array<i32>} : memref<8x8x32xf32, #tpu.memory_space<vmem>>, vector<1x8x32xf32>,
    %c7_i32 = arith.constant 7 : i32
    %288 = arith.index_cast %c7_i32 : i32 to index
    %c0_129 = arith.constant 0 : index
    %c0_130 = arith.constant 0 : index
    %289 = vector.load %arg10[%288, %c0_129, %c0_130] : memref<8x8x128xf32, #tpu.memory_space<vmem>>, vector<1x8x128xf32>
    %290 = vector.shape_cast %289 : vector<1x8x128xf32> to vector<8x128xf32>
    %c0_131 = arith.constant 0 : index
    %c0_132 = arith.constant 0 : index
    %291 = vector.load %arg12[%c0_131, %c0_132] : memref<8x32xf32, #tpu.memory_space<vmem>>, vector<8x32xf32>
    %292 = arith.truncf %291 : vector<8x32xf32> to vector<8x32xbf16>
    %cst_133 = arith.constant dense<0.000000e+00> : vector<8x128xf32>
    %293 = tpu.matmul %292, %14, %cst_133 {dimension_numbers = #tpu.dot_dimension_numbers<[1], [0], [0], [1], [0, 0, 1, 1], [], []>} : vector<8x32xbf16>, vector<32x128xbf16>, vector<8x128xf32> -> vector<8x128xf32>
    %294 = arith.addf %290, %293 : vector<8x128xf32>
    %295 = vector.extract_strided_slice %294 {offsets = [0, 0], sizes = [8, 32], strides = [1, 1]} : vector<8x128xf32> to vector<8x32xf32>
    %296 = arith.negf %295 : vector<8x32xf32>
    %297 = math.exp %296 : vector<8x32xf32>
    %cst_134 = arith.constant 1.000000e+00 : f32
    %298 = vector.broadcast %cst_134 : f32 to vector<8x32xf32>
    %299 = arith.addf %298, %297 : vector<8x32xf32>
    %300 = arith.divf %298, %299 : vector<8x32xf32>
    %301 = vector.extract_strided_slice %294 {offsets = [0, 32], sizes = [8, 32], strides = [1, 1]} : vector<8x128xf32> to vector<8x32xf32>
    %302 = arith.negf %301 : vector<8x32xf32>
    %303 = math.exp %302 : vector<8x32xf32>
    %cst_135 = arith.constant 1.000000e+00 : f32
    %304 = vector.broadcast %cst_135 : f32 to vector<8x32xf32>
    %305 = arith.addf %304, %303 : vector<8x32xf32>
    %306 = arith.divf %304, %305 : vector<8x32xf32>
    %307 = vector.extract_strided_slice %294 {offsets = [0, 64], sizes = [8, 32], strides = [1, 1]} : vector<8x128xf32> to vector<8x32xf32>
    %308 = math.tanh %307 : vector<8x32xf32>
    %309 = vector.extract_strided_slice %294 {offsets = [0, 96], sizes = [8, 32], strides = [1, 1]} : vector<8x128xf32> to vector<8x32xf32>
    %310 = arith.negf %309 : vector<8x32xf32>
    %311 = math.exp %310 : vector<8x32xf32>
    %cst_136 = arith.constant 1.000000e+00 : f32
    %312 = vector.broadcast %cst_136 : f32 to vector<8x32xf32>
    %313 = arith.addf %312, %311 : vector<8x32xf32>
    %314 = arith.divf %312, %313 : vector<8x32xf32>
    %c0_137 = arith.constant 0 : index
    %c0_138 = arith.constant 0 : index
    %315 = vector.load %arg13[%c0_137, %c0_138] : memref<8x32xf32, #tpu.memory_space<vmem>>, vector<8x32xf32>
    %316 = arith.mulf %306, %315 : vector<8x32xf32>
    %317 = arith.mulf %300, %308 : vector<8x32xf32>
    %318 = arith.addf %316, %317 : vector<8x32xf32>
    %319 = math.tanh %318 : vector<8x32xf32>
    %320 = arith.mulf %314, %319 : vector<8x32xf32>
    %c0_139 = arith.constant 0 : index
    %c0_140 = arith.constant 0 : index
    %321 = vector.load %arg13[%c0_139, %c0_140] : memref<8x32xf32, #tpu.memory_space<vmem>>, vector<8x32xf32>
    tpu.vector_store %arg13[%c0_139, %c0_140], %318 {strides = array<i32>} : memref<8x32xf32, #tpu.memory_space<vmem>>, vector<8x32xf32>,
    %c0_141 = arith.constant 0 : index
    %c0_142 = arith.constant 0 : index
    %322 = vector.load %arg12[%c0_141, %c0_142] : memref<8x32xf32, #tpu.memory_space<vmem>>, vector<8x32xf32>
    tpu.vector_store %arg12[%c0_141, %c0_142], %320 {strides = array<i32>} : memref<8x32xf32, #tpu.memory_space<vmem>>, vector<8x32xf32>,
    %323 = arith.index_cast %c7_i32 : i32 to index
    %c0_143 = arith.constant 0 : index
    %c0_144 = arith.constant 0 : index
    %324 = vector.load %arg11[%323, %c0_143, %c0_144] : memref<8x8x32xf32, #tpu.memory_space<vmem>>, vector<1x8x32xf32>
    %325 = vector.shape_cast %324 : vector<1x8x32xf32> to vector<8x32xf32>
    %326 = vector.shape_cast %320 : vector<8x32xf32> to vector<1x8x32xf32>
    tpu.vector_store %arg11[%323, %c0_143, %c0_144], %326 {strides = array<i32>} : memref<8x8x32xf32, #tpu.memory_space<vmem>>, vector<1x8x32xf32>,
    %c8_i32 = arith.constant 8 : i32
    %c0_145 = arith.constant 0 : index
    %c0_146 = arith.constant 0 : index
    %c0_147 = arith.constant 0 : index
    %327 = vector.load %arg11[%c0_145, %c0_146, %c0_147] : memref<8x8x32xf32, #tpu.memory_space<vmem>>, vector<8x8x32xf32>
    %328 = vector.shape_cast %327 : vector<8x8x32xf32> to vector<64x32xf32>
    %329 = arith.truncf %328 : vector<64x32xf32> to vector<64x32xbf16>
    %c0_148 = arith.constant 0 : index
    %c0_149 = arith.constant 0 : index
    %330 = vector.load %arg4[%c0_148, %c0_149] : memref<32x128xbf16, #tpu.memory_space<vmem>>, vector<32x128xbf16>
    %cst_150 = arith.constant dense<0.000000e+00> : vector<64x128xf32>
    %331 = tpu.matmul %329, %330, %cst_150 {dimension_numbers = #tpu.dot_dimension_numbers<[1], [0], [0], [1], [0, 0, 1, 1], [], []>} : vector<64x32xbf16>, vector<32x128xbf16>, vector<64x128xf32> -> vector<64x128xf32>
    %c0_151 = arith.constant 0 : index
    %c0_152 = arith.constant 0 : index
    %332 = vector.load %arg6[%c0_151, %c0_152] : memref<1x128xf32, #tpu.memory_space<vmem>>, vector<1x128xf32>
    %333 = vector.broadcast %332 : vector<1x128xf32> to vector<64x128xf32>
    %334 = arith.addf %331, %333 : vector<64x128xf32>
    %335 = vector.shape_cast %334 : vector<64x128xf32> to vector<8x8x128xf32>
    %c0_153 = arith.constant 0 : index
    %c0_154 = arith.constant 0 : index
    %c0_155 = arith.constant 0 : index
    %336 = vector.load %arg10[%c0_153, %c0_154, %c0_155] : memref<8x8x128xf32, #tpu.memory_space<vmem>>, vector<8x8x128xf32>
    tpu.vector_store %arg10[%c0_153, %c0_154, %c0_155], %335 {strides = array<i32>} : memref<8x8x128xf32, #tpu.memory_space<vmem>>, vector<8x8x128xf32>,
    %cst_156 = arith.constant 0.000000e+00 : f32
    %337 = vector.broadcast %cst_156 : f32 to vector<8x32xf32>
    %c0_157 = arith.constant 0 : index
    %c0_158 = arith.constant 0 : index
    %338 = vector.load %arg12[%c0_157, %c0_158] : memref<8x32xf32, #tpu.memory_space<vmem>>, vector<8x32xf32>
    tpu.vector_store %arg12[%c0_157, %c0_158], %337 {strides = array<i32>} : memref<8x32xf32, #tpu.memory_space<vmem>>, vector<8x32xf32>,
    %cst_159 = arith.constant 0.000000e+00 : f32
    %339 = vector.broadcast %cst_159 : f32 to vector<8x32xf32>
    %c0_160 = arith.constant 0 : index
    %c0_161 = arith.constant 0 : index
    %340 = vector.load %arg13[%c0_160, %c0_161] : memref<8x32xf32, #tpu.memory_space<vmem>>, vector<8x32xf32>
    tpu.vector_store %arg13[%c0_160, %c0_161], %339 {strides = array<i32>} : memref<8x32xf32, #tpu.memory_space<vmem>>, vector<8x32xf32>,
    %c0_162 = arith.constant 0 : index
    %c0_163 = arith.constant 0 : index
    %341 = vector.load %arg5[%c0_162, %c0_163] : memref<32x128xbf16, #tpu.memory_space<vmem>>, vector<32x128xbf16>
    %c0_i32_164 = arith.constant 0 : i32
    %342 = arith.index_cast %c0_i32_164 : i32 to index
    %c0_165 = arith.constant 0 : index
    %c0_166 = arith.constant 0 : index
    %343 = vector.load %arg10[%342, %c0_165, %c0_166] : memref<8x8x128xf32, #tpu.memory_space<vmem>>, vector<1x8x128xf32>
    %344 = vector.shape_cast %343 : vector<1x8x128xf32> to vector<8x128xf32>
    %c0_167 = arith.constant 0 : index
    %c0_168 = arith.constant 0 : index
    %345 = vector.load %arg12[%c0_167, %c0_168] : memref<8x32xf32, #tpu.memory_space<vmem>>, vector<8x32xf32>
    %346 = arith.truncf %345 : vector<8x32xf32> to vector<8x32xbf16>
    %cst_169 = arith.constant dense<0.000000e+00> : vector<8x128xf32>
    %347 = tpu.matmul %346, %341, %cst_169 {dimension_numbers = #tpu.dot_dimension_numbers<[1], [0], [0], [1], [0, 0, 1, 1], [], []>} : vector<8x32xbf16>, vector<32x128xbf16>, vector<8x128xf32> -> vector<8x128xf32>
    %348 = arith.addf %344, %347 : vector<8x128xf32>
    %349 = vector.extract_strided_slice %348 {offsets = [0, 0], sizes = [8, 32], strides = [1, 1]} : vector<8x128xf32> to vector<8x32xf32>
    %350 = arith.negf %349 : vector<8x32xf32>
    %351 = math.exp %350 : vector<8x32xf32>
    %cst_170 = arith.constant 1.000000e+00 : f32
    %352 = vector.broadcast %cst_170 : f32 to vector<8x32xf32>
    %353 = arith.addf %352, %351 : vector<8x32xf32>
    %354 = arith.divf %352, %353 : vector<8x32xf32>
    %355 = vector.extract_strided_slice %348 {offsets = [0, 32], sizes = [8, 32], strides = [1, 1]} : vector<8x128xf32> to vector<8x32xf32>
    %356 = arith.negf %355 : vector<8x32xf32>
    %357 = math.exp %356 : vector<8x32xf32>
    %cst_171 = arith.constant 1.000000e+00 : f32
    %358 = vector.broadcast %cst_171 : f32 to vector<8x32xf32>
    %359 = arith.addf %358, %357 : vector<8x32xf32>
    %360 = arith.divf %358, %359 : vector<8x32xf32>
    %361 = vector.extract_strided_slice %348 {offsets = [0, 64], sizes = [8, 32], strides = [1, 1]} : vector<8x128xf32> to vector<8x32xf32>
    %362 = math.tanh %361 : vector<8x32xf32>
    %363 = vector.extract_strided_slice %348 {offsets = [0, 96], sizes = [8, 32], strides = [1, 1]} : vector<8x128xf32> to vector<8x32xf32>
    %364 = arith.negf %363 : vector<8x32xf32>
    %365 = math.exp %364 : vector<8x32xf32>
    %cst_172 = arith.constant 1.000000e+00 : f32
    %366 = vector.broadcast %cst_172 : f32 to vector<8x32xf32>
    %367 = arith.addf %366, %365 : vector<8x32xf32>
    %368 = arith.divf %366, %367 : vector<8x32xf32>
    %c0_173 = arith.constant 0 : index
    %c0_174 = arith.constant 0 : index
    %369 = vector.load %arg13[%c0_173, %c0_174] : memref<8x32xf32, #tpu.memory_space<vmem>>, vector<8x32xf32>
    %370 = arith.mulf %360, %369 : vector<8x32xf32>
    %371 = arith.mulf %354, %362 : vector<8x32xf32>
    %372 = arith.addf %370, %371 : vector<8x32xf32>
    %373 = math.tanh %372 : vector<8x32xf32>
    %374 = arith.mulf %368, %373 : vector<8x32xf32>
    %c0_175 = arith.constant 0 : index
    %c0_176 = arith.constant 0 : index
    %375 = vector.load %arg13[%c0_175, %c0_176] : memref<8x32xf32, #tpu.memory_space<vmem>>, vector<8x32xf32>
    tpu.vector_store %arg13[%c0_175, %c0_176], %372 {strides = array<i32>} : memref<8x32xf32, #tpu.memory_space<vmem>>, vector<8x32xf32>,
    %c0_177 = arith.constant 0 : index
    %c0_178 = arith.constant 0 : index
    %376 = vector.load %arg12[%c0_177, %c0_178] : memref<8x32xf32, #tpu.memory_space<vmem>>, vector<8x32xf32>
    tpu.vector_store %arg12[%c0_177, %c0_178], %374 {strides = array<i32>} : memref<8x32xf32, #tpu.memory_space<vmem>>, vector<8x32xf32>,
    %377 = arith.index_cast %c0_i32_164 : i32 to index
    %c0_179 = arith.constant 0 : index
    %c0_180 = arith.constant 0 : index
    %378 = vector.load %arg11[%377, %c0_179, %c0_180] : memref<8x8x32xf32, #tpu.memory_space<vmem>>, vector<1x8x32xf32>
    %379 = vector.shape_cast %378 : vector<1x8x32xf32> to vector<8x32xf32>
    %380 = vector.shape_cast %374 : vector<8x32xf32> to vector<1x8x32xf32>
    tpu.vector_store %arg11[%377, %c0_179, %c0_180], %380 {strides = array<i32>} : memref<8x8x32xf32, #tpu.memory_space<vmem>>, vector<1x8x32xf32>,
    %c1_i32_181 = arith.constant 1 : i32
    %381 = arith.index_cast %c1_i32_181 : i32 to index
    %c0_182 = arith.constant 0 : index
    %c0_183 = arith.constant 0 : index
    %382 = vector.load %arg10[%381, %c0_182, %c0_183] : memref<8x8x128xf32, #tpu.memory_space<vmem>>, vector<1x8x128xf32>
    %383 = vector.shape_cast %382 : vector<1x8x128xf32> to vector<8x128xf32>
    %c0_184 = arith.constant 0 : index
    %c0_185 = arith.constant 0 : index
    %384 = vector.load %arg12[%c0_184, %c0_185] : memref<8x32xf32, #tpu.memory_space<vmem>>, vector<8x32xf32>
    %385 = arith.truncf %384 : vector<8x32xf32> to vector<8x32xbf16>
    %cst_186 = arith.constant dense<0.000000e+00> : vector<8x128xf32>
    %386 = tpu.matmul %385, %341, %cst_186 {dimension_numbers = #tpu.dot_dimension_numbers<[1], [0], [0], [1], [0, 0, 1, 1], [], []>} : vector<8x32xbf16>, vector<32x128xbf16>, vector<8x128xf32> -> vector<8x128xf32>
    %387 = arith.addf %383, %386 : vector<8x128xf32>
    %388 = vector.extract_strided_slice %387 {offsets = [0, 0], sizes = [8, 32], strides = [1, 1]} : vector<8x128xf32> to vector<8x32xf32>
    %389 = arith.negf %388 : vector<8x32xf32>
    %390 = math.exp %389 : vector<8x32xf32>
    %cst_187 = arith.constant 1.000000e+00 : f32
    %391 = vector.broadcast %cst_187 : f32 to vector<8x32xf32>
    %392 = arith.addf %391, %390 : vector<8x32xf32>
    %393 = arith.divf %391, %392 : vector<8x32xf32>
    %394 = vector.extract_strided_slice %387 {offsets = [0, 32], sizes = [8, 32], strides = [1, 1]} : vector<8x128xf32> to vector<8x32xf32>
    %395 = arith.negf %394 : vector<8x32xf32>
    %396 = math.exp %395 : vector<8x32xf32>
    %cst_188 = arith.constant 1.000000e+00 : f32
    %397 = vector.broadcast %cst_188 : f32 to vector<8x32xf32>
    %398 = arith.addf %397, %396 : vector<8x32xf32>
    %399 = arith.divf %397, %398 : vector<8x32xf32>
    %400 = vector.extract_strided_slice %387 {offsets = [0, 64], sizes = [8, 32], strides = [1, 1]} : vector<8x128xf32> to vector<8x32xf32>
    %401 = math.tanh %400 : vector<8x32xf32>
    %402 = vector.extract_strided_slice %387 {offsets = [0, 96], sizes = [8, 32], strides = [1, 1]} : vector<8x128xf32> to vector<8x32xf32>
    %403 = arith.negf %402 : vector<8x32xf32>
    %404 = math.exp %403 : vector<8x32xf32>
    %cst_189 = arith.constant 1.000000e+00 : f32
    %405 = vector.broadcast %cst_189 : f32 to vector<8x32xf32>
    %406 = arith.addf %405, %404 : vector<8x32xf32>
    %407 = arith.divf %405, %406 : vector<8x32xf32>
    %c0_190 = arith.constant 0 : index
    %c0_191 = arith.constant 0 : index
    %408 = vector.load %arg13[%c0_190, %c0_191] : memref<8x32xf32, #tpu.memory_space<vmem>>, vector<8x32xf32>
    %409 = arith.mulf %399, %408 : vector<8x32xf32>
    %410 = arith.mulf %393, %401 : vector<8x32xf32>
    %411 = arith.addf %409, %410 : vector<8x32xf32>
    %412 = math.tanh %411 : vector<8x32xf32>
    %413 = arith.mulf %407, %412 : vector<8x32xf32>
    %c0_192 = arith.constant 0 : index
    %c0_193 = arith.constant 0 : index
    %414 = vector.load %arg13[%c0_192, %c0_193] : memref<8x32xf32, #tpu.memory_space<vmem>>, vector<8x32xf32>
    tpu.vector_store %arg13[%c0_192, %c0_193], %411 {strides = array<i32>} : memref<8x32xf32, #tpu.memory_space<vmem>>, vector<8x32xf32>,
    %c0_194 = arith.constant 0 : index
    %c0_195 = arith.constant 0 : index
    %415 = vector.load %arg12[%c0_194, %c0_195] : memref<8x32xf32, #tpu.memory_space<vmem>>, vector<8x32xf32>
    tpu.vector_store %arg12[%c0_194, %c0_195], %413 {strides = array<i32>} : memref<8x32xf32, #tpu.memory_space<vmem>>, vector<8x32xf32>,
    %416 = arith.index_cast %c1_i32_181 : i32 to index
    %c0_196 = arith.constant 0 : index
    %c0_197 = arith.constant 0 : index
    %417 = vector.load %arg11[%416, %c0_196, %c0_197] : memref<8x8x32xf32, #tpu.memory_space<vmem>>, vector<1x8x32xf32>
    %418 = vector.shape_cast %417 : vector<1x8x32xf32> to vector<8x32xf32>
    %419 = vector.shape_cast %413 : vector<8x32xf32> to vector<1x8x32xf32>
    tpu.vector_store %arg11[%416, %c0_196, %c0_197], %419 {strides = array<i32>} : memref<8x8x32xf32, #tpu.memory_space<vmem>>, vector<1x8x32xf32>,
    %c2_i32_198 = arith.constant 2 : i32
    %420 = arith.index_cast %c2_i32_198 : i32 to index
    %c0_199 = arith.constant 0 : index
    %c0_200 = arith.constant 0 : index
    %421 = vector.load %arg10[%420, %c0_199, %c0_200] : memref<8x8x128xf32, #tpu.memory_space<vmem>>, vector<1x8x128xf32>
    %422 = vector.shape_cast %421 : vector<1x8x128xf32> to vector<8x128xf32>
    %c0_201 = arith.constant 0 : index
    %c0_202 = arith.constant 0 : index
    %423 = vector.load %arg12[%c0_201, %c0_202] : memref<8x32xf32, #tpu.memory_space<vmem>>, vector<8x32xf32>
    %424 = arith.truncf %423 : vector<8x32xf32> to vector<8x32xbf16>
    %cst_203 = arith.constant dense<0.000000e+00> : vector<8x128xf32>
    %425 = tpu.matmul %424, %341, %cst_203 {dimension_numbers = #tpu.dot_dimension_numbers<[1], [0], [0], [1], [0, 0, 1, 1], [], []>} : vector<8x32xbf16>, vector<32x128xbf16>, vector<8x128xf32> -> vector<8x128xf32>
    %426 = arith.addf %422, %425 : vector<8x128xf32>
    %427 = vector.extract_strided_slice %426 {offsets = [0, 0], sizes = [8, 32], strides = [1, 1]} : vector<8x128xf32> to vector<8x32xf32>
    %428 = arith.negf %427 : vector<8x32xf32>
    %429 = math.exp %428 : vector<8x32xf32>
    %cst_204 = arith.constant 1.000000e+00 : f32
    %430 = vector.broadcast %cst_204 : f32 to vector<8x32xf32>
    %431 = arith.addf %430, %429 : vector<8x32xf32>
    %432 = arith.divf %430, %431 : vector<8x32xf32>
    %433 = vector.extract_strided_slice %426 {offsets = [0, 32], sizes = [8, 32], strides = [1, 1]} : vector<8x128xf32> to vector<8x32xf32>
    %434 = arith.negf %433 : vector<8x32xf32>
    %435 = math.exp %434 : vector<8x32xf32>
    %cst_205 = arith.constant 1.000000e+00 : f32
    %436 = vector.broadcast %cst_205 : f32 to vector<8x32xf32>
    %437 = arith.addf %436, %435 : vector<8x32xf32>
    %438 = arith.divf %436, %437 : vector<8x32xf32>
    %439 = vector.extract_strided_slice %426 {offsets = [0, 64], sizes = [8, 32], strides = [1, 1]} : vector<8x128xf32> to vector<8x32xf32>
    %440 = math.tanh %439 : vector<8x32xf32>
    %441 = vector.extract_strided_slice %426 {offsets = [0, 96], sizes = [8, 32], strides = [1, 1]} : vector<8x128xf32> to vector<8x32xf32>
    %442 = arith.negf %441 : vector<8x32xf32>
    %443 = math.exp %442 : vector<8x32xf32>
    %cst_206 = arith.constant 1.000000e+00 : f32
    %444 = vector.broadcast %cst_206 : f32 to vector<8x32xf32>
    %445 = arith.addf %444, %443 : vector<8x32xf32>
    %446 = arith.divf %444, %445 : vector<8x32xf32>
    %c0_207 = arith.constant 0 : index
    %c0_208 = arith.constant 0 : index
    %447 = vector.load %arg13[%c0_207, %c0_208] : memref<8x32xf32, #tpu.memory_space<vmem>>, vector<8x32xf32>
    %448 = arith.mulf %438, %447 : vector<8x32xf32>
    %449 = arith.mulf %432, %440 : vector<8x32xf32>
    %450 = arith.addf %448, %449 : vector<8x32xf32>
    %451 = math.tanh %450 : vector<8x32xf32>
    %452 = arith.mulf %446, %451 : vector<8x32xf32>
    %c0_209 = arith.constant 0 : index
    %c0_210 = arith.constant 0 : index
    %453 = vector.load %arg13[%c0_209, %c0_210] : memref<8x32xf32, #tpu.memory_space<vmem>>, vector<8x32xf32>
    tpu.vector_store %arg13[%c0_209, %c0_210], %450 {strides = array<i32>} : memref<8x32xf32, #tpu.memory_space<vmem>>, vector<8x32xf32>,
    %c0_211 = arith.constant 0 : index
    %c0_212 = arith.constant 0 : index
    %454 = vector.load %arg12[%c0_211, %c0_212] : memref<8x32xf32, #tpu.memory_space<vmem>>, vector<8x32xf32>
    tpu.vector_store %arg12[%c0_211, %c0_212], %452 {strides = array<i32>} : memref<8x32xf32, #tpu.memory_space<vmem>>, vector<8x32xf32>,
    %455 = arith.index_cast %c2_i32_198 : i32 to index
    %c0_213 = arith.constant 0 : index
    %c0_214 = arith.constant 0 : index
    %456 = vector.load %arg11[%455, %c0_213, %c0_214] : memref<8x8x32xf32, #tpu.memory_space<vmem>>, vector<1x8x32xf32>
    %457 = vector.shape_cast %456 : vector<1x8x32xf32> to vector<8x32xf32>
    %458 = vector.shape_cast %452 : vector<8x32xf32> to vector<1x8x32xf32>
    tpu.vector_store %arg11[%455, %c0_213, %c0_214], %458 {strides = array<i32>} : memref<8x8x32xf32, #tpu.memory_space<vmem>>, vector<1x8x32xf32>,
    %c3_i32_215 = arith.constant 3 : i32
    %459 = arith.index_cast %c3_i32_215 : i32 to index
    %c0_216 = arith.constant 0 : index
    %c0_217 = arith.constant 0 : index
    %460 = vector.load %arg10[%459, %c0_216, %c0_217] : memref<8x8x128xf32, #tpu.memory_space<vmem>>, vector<1x8x128xf32>
    %461 = vector.shape_cast %460 : vector<1x8x128xf32> to vector<8x128xf32>
    %c0_218 = arith.constant 0 : index
    %c0_219 = arith.constant 0 : index
    %462 = vector.load %arg12[%c0_218, %c0_219] : memref<8x32xf32, #tpu.memory_space<vmem>>, vector<8x32xf32>
    %463 = arith.truncf %462 : vector<8x32xf32> to vector<8x32xbf16>
    %cst_220 = arith.constant dense<0.000000e+00> : vector<8x128xf32>
    %464 = tpu.matmul %463, %341, %cst_220 {dimension_numbers = #tpu.dot_dimension_numbers<[1], [0], [0], [1], [0, 0, 1, 1], [], []>} : vector<8x32xbf16>, vector<32x128xbf16>, vector<8x128xf32> -> vector<8x128xf32>
    %465 = arith.addf %461, %464 : vector<8x128xf32>
    %466 = vector.extract_strided_slice %465 {offsets = [0, 0], sizes = [8, 32], strides = [1, 1]} : vector<8x128xf32> to vector<8x32xf32>
    %467 = arith.negf %466 : vector<8x32xf32>
    %468 = math.exp %467 : vector<8x32xf32>
    %cst_221 = arith.constant 1.000000e+00 : f32
    %469 = vector.broadcast %cst_221 : f32 to vector<8x32xf32>
    %470 = arith.addf %469, %468 : vector<8x32xf32>
    %471 = arith.divf %469, %470 : vector<8x32xf32>
    %472 = vector.extract_strided_slice %465 {offsets = [0, 32], sizes = [8, 32], strides = [1, 1]} : vector<8x128xf32> to vector<8x32xf32>
    %473 = arith.negf %472 : vector<8x32xf32>
    %474 = math.exp %473 : vector<8x32xf32>
    %cst_222 = arith.constant 1.000000e+00 : f32
    %475 = vector.broadcast %cst_222 : f32 to vector<8x32xf32>
    %476 = arith.addf %475, %474 : vector<8x32xf32>
    %477 = arith.divf %475, %476 : vector<8x32xf32>
    %478 = vector.extract_strided_slice %465 {offsets = [0, 64], sizes = [8, 32], strides = [1, 1]} : vector<8x128xf32> to vector<8x32xf32>
    %479 = math.tanh %478 : vector<8x32xf32>
    %480 = vector.extract_strided_slice %465 {offsets = [0, 96], sizes = [8, 32], strides = [1, 1]} : vector<8x128xf32> to vector<8x32xf32>
    %481 = arith.negf %480 : vector<8x32xf32>
    %482 = math.exp %481 : vector<8x32xf32>
    %cst_223 = arith.constant 1.000000e+00 : f32
    %483 = vector.broadcast %cst_223 : f32 to vector<8x32xf32>
    %484 = arith.addf %483, %482 : vector<8x32xf32>
    %485 = arith.divf %483, %484 : vector<8x32xf32>
    %c0_224 = arith.constant 0 : index
    %c0_225 = arith.constant 0 : index
    %486 = vector.load %arg13[%c0_224, %c0_225] : memref<8x32xf32, #tpu.memory_space<vmem>>, vector<8x32xf32>
    %487 = arith.mulf %477, %486 : vector<8x32xf32>
    %488 = arith.mulf %471, %479 : vector<8x32xf32>
    %489 = arith.addf %487, %488 : vector<8x32xf32>
    %490 = math.tanh %489 : vector<8x32xf32>
    %491 = arith.mulf %485, %490 : vector<8x32xf32>
    %c0_226 = arith.constant 0 : index
    %c0_227 = arith.constant 0 : index
    %492 = vector.load %arg13[%c0_226, %c0_227] : memref<8x32xf32, #tpu.memory_space<vmem>>, vector<8x32xf32>
    tpu.vector_store %arg13[%c0_226, %c0_227], %489 {strides = array<i32>} : memref<8x32xf32, #tpu.memory_space<vmem>>, vector<8x32xf32>,
    %c0_228 = arith.constant 0 : index
    %c0_229 = arith.constant 0 : index
    %493 = vector.load %arg12[%c0_228, %c0_229] : memref<8x32xf32, #tpu.memory_space<vmem>>, vector<8x32xf32>
    tpu.vector_store %arg12[%c0_228, %c0_229], %491 {strides = array<i32>} : memref<8x32xf32, #tpu.memory_space<vmem>>, vector<8x32xf32>,
    %494 = arith.index_cast %c3_i32_215 : i32 to index
    %c0_230 = arith.constant 0 : index
    %c0_231 = arith.constant 0 : index
    %495 = vector.load %arg11[%494, %c0_230, %c0_231] : memref<8x8x32xf32, #tpu.memory_space<vmem>>, vector<1x8x32xf32>
    %496 = vector.shape_cast %495 : vector<1x8x32xf32> to vector<8x32xf32>
    %497 = vector.shape_cast %491 : vector<8x32xf32> to vector<1x8x32xf32>
    tpu.vector_store %arg11[%494, %c0_230, %c0_231], %497 {strides = array<i32>} : memref<8x8x32xf32, #tpu.memory_space<vmem>>, vector<1x8x32xf32>,
    %c4_i32_232 = arith.constant 4 : i32
    %498 = arith.index_cast %c4_i32_232 : i32 to index
    %c0_233 = arith.constant 0 : index
    %c0_234 = arith.constant 0 : index
    %499 = vector.load %arg10[%498, %c0_233, %c0_234] : memref<8x8x128xf32, #tpu.memory_space<vmem>>, vector<1x8x128xf32>
    %500 = vector.shape_cast %499 : vector<1x8x128xf32> to vector<8x128xf32>
    %c0_235 = arith.constant 0 : index
    %c0_236 = arith.constant 0 : index
    %501 = vector.load %arg12[%c0_235, %c0_236] : memref<8x32xf32, #tpu.memory_space<vmem>>, vector<8x32xf32>
    %502 = arith.truncf %501 : vector<8x32xf32> to vector<8x32xbf16>
    %cst_237 = arith.constant dense<0.000000e+00> : vector<8x128xf32>
    %503 = tpu.matmul %502, %341, %cst_237 {dimension_numbers = #tpu.dot_dimension_numbers<[1], [0], [0], [1], [0, 0, 1, 1], [], []>} : vector<8x32xbf16>, vector<32x128xbf16>, vector<8x128xf32> -> vector<8x128xf32>
    %504 = arith.addf %500, %503 : vector<8x128xf32>
    %505 = vector.extract_strided_slice %504 {offsets = [0, 0], sizes = [8, 32], strides = [1, 1]} : vector<8x128xf32> to vector<8x32xf32>
    %506 = arith.negf %505 : vector<8x32xf32>
    %507 = math.exp %506 : vector<8x32xf32>
    %cst_238 = arith.constant 1.000000e+00 : f32
    %508 = vector.broadcast %cst_238 : f32 to vector<8x32xf32>
    %509 = arith.addf %508, %507 : vector<8x32xf32>
    %510 = arith.divf %508, %509 : vector<8x32xf32>
    %511 = vector.extract_strided_slice %504 {offsets = [0, 32], sizes = [8, 32], strides = [1, 1]} : vector<8x128xf32> to vector<8x32xf32>
    %512 = arith.negf %511 : vector<8x32xf32>
    %513 = math.exp %512 : vector<8x32xf32>
    %cst_239 = arith.constant 1.000000e+00 : f32
    %514 = vector.broadcast %cst_239 : f32 to vector<8x32xf32>
    %515 = arith.addf %514, %513 : vector<8x32xf32>
    %516 = arith.divf %514, %515 : vector<8x32xf32>
    %517 = vector.extract_strided_slice %504 {offsets = [0, 64], sizes = [8, 32], strides = [1, 1]} : vector<8x128xf32> to vector<8x32xf32>
    %518 = math.tanh %517 : vector<8x32xf32>
    %519 = vector.extract_strided_slice %504 {offsets = [0, 96], sizes = [8, 32], strides = [1, 1]} : vector<8x128xf32> to vector<8x32xf32>
    %520 = arith.negf %519 : vector<8x32xf32>
    %521 = math.exp %520 : vector<8x32xf32>
    %cst_240 = arith.constant 1.000000e+00 : f32
    %522 = vector.broadcast %cst_240 : f32 to vector<8x32xf32>
    %523 = arith.addf %522, %521 : vector<8x32xf32>
    %524 = arith.divf %522, %523 : vector<8x32xf32>
    %c0_241 = arith.constant 0 : index
    %c0_242 = arith.constant 0 : index
    %525 = vector.load %arg13[%c0_241, %c0_242] : memref<8x32xf32, #tpu.memory_space<vmem>>, vector<8x32xf32>
    %526 = arith.mulf %516, %525 : vector<8x32xf32>
    %527 = arith.mulf %510, %518 : vector<8x32xf32>
    %528 = arith.addf %526, %527 : vector<8x32xf32>
    %529 = math.tanh %528 : vector<8x32xf32>
    %530 = arith.mulf %524, %529 : vector<8x32xf32>
    %c0_243 = arith.constant 0 : index
    %c0_244 = arith.constant 0 : index
    %531 = vector.load %arg13[%c0_243, %c0_244] : memref<8x32xf32, #tpu.memory_space<vmem>>, vector<8x32xf32>
    tpu.vector_store %arg13[%c0_243, %c0_244], %528 {strides = array<i32>} : memref<8x32xf32, #tpu.memory_space<vmem>>, vector<8x32xf32>,
    %c0_245 = arith.constant 0 : index
    %c0_246 = arith.constant 0 : index
    %532 = vector.load %arg12[%c0_245, %c0_246] : memref<8x32xf32, #tpu.memory_space<vmem>>, vector<8x32xf32>
    tpu.vector_store %arg12[%c0_245, %c0_246], %530 {strides = array<i32>} : memref<8x32xf32, #tpu.memory_space<vmem>>, vector<8x32xf32>,
    %533 = arith.index_cast %c4_i32_232 : i32 to index
    %c0_247 = arith.constant 0 : index
    %c0_248 = arith.constant 0 : index
    %534 = vector.load %arg11[%533, %c0_247, %c0_248] : memref<8x8x32xf32, #tpu.memory_space<vmem>>, vector<1x8x32xf32>
    %535 = vector.shape_cast %534 : vector<1x8x32xf32> to vector<8x32xf32>
    %536 = vector.shape_cast %530 : vector<8x32xf32> to vector<1x8x32xf32>
    tpu.vector_store %arg11[%533, %c0_247, %c0_248], %536 {strides = array<i32>} : memref<8x8x32xf32, #tpu.memory_space<vmem>>, vector<1x8x32xf32>,
    %c5_i32_249 = arith.constant 5 : i32
    %537 = arith.index_cast %c5_i32_249 : i32 to index
    %c0_250 = arith.constant 0 : index
    %c0_251 = arith.constant 0 : index
    %538 = vector.load %arg10[%537, %c0_250, %c0_251] : memref<8x8x128xf32, #tpu.memory_space<vmem>>, vector<1x8x128xf32>
    %539 = vector.shape_cast %538 : vector<1x8x128xf32> to vector<8x128xf32>
    %c0_252 = arith.constant 0 : index
    %c0_253 = arith.constant 0 : index
    %540 = vector.load %arg12[%c0_252, %c0_253] : memref<8x32xf32, #tpu.memory_space<vmem>>, vector<8x32xf32>
    %541 = arith.truncf %540 : vector<8x32xf32> to vector<8x32xbf16>
    %cst_254 = arith.constant dense<0.000000e+00> : vector<8x128xf32>
    %542 = tpu.matmul %541, %341, %cst_254 {dimension_numbers = #tpu.dot_dimension_numbers<[1], [0], [0], [1], [0, 0, 1, 1], [], []>} : vector<8x32xbf16>, vector<32x128xbf16>, vector<8x128xf32> -> vector<8x128xf32>
    %543 = arith.addf %539, %542 : vector<8x128xf32>
    %544 = vector.extract_strided_slice %543 {offsets = [0, 0], sizes = [8, 32], strides = [1, 1]} : vector<8x128xf32> to vector<8x32xf32>
    %545 = arith.negf %544 : vector<8x32xf32>
    %546 = math.exp %545 : vector<8x32xf32>
    %cst_255 = arith.constant 1.000000e+00 : f32
    %547 = vector.broadcast %cst_255 : f32 to vector<8x32xf32>
    %548 = arith.addf %547, %546 : vector<8x32xf32>
    %549 = arith.divf %547, %548 : vector<8x32xf32>
    %550 = vector.extract_strided_slice %543 {offsets = [0, 32], sizes = [8, 32], strides = [1, 1]} : vector<8x128xf32> to vector<8x32xf32>
    %551 = arith.negf %550 : vector<8x32xf32>
    %552 = math.exp %551 : vector<8x32xf32>
    %cst_256 = arith.constant 1.000000e+00 : f32
    %553 = vector.broadcast %cst_256 : f32 to vector<8x32xf32>
    %554 = arith.addf %553, %552 : vector<8x32xf32>
    %555 = arith.divf %553, %554 : vector<8x32xf32>
    %556 = vector.extract_strided_slice %543 {offsets = [0, 64], sizes = [8, 32], strides = [1, 1]} : vector<8x128xf32> to vector<8x32xf32>
    %557 = math.tanh %556 : vector<8x32xf32>
    %558 = vector.extract_strided_slice %543 {offsets = [0, 96], sizes = [8, 32], strides = [1, 1]} : vector<8x128xf32> to vector<8x32xf32>
    %559 = arith.negf %558 : vector<8x32xf32>
    %560 = math.exp %559 : vector<8x32xf32>
    %cst_257 = arith.constant 1.000000e+00 : f32
    %561 = vector.broadcast %cst_257 : f32 to vector<8x32xf32>
    %562 = arith.addf %561, %560 : vector<8x32xf32>
    %563 = arith.divf %561, %562 : vector<8x32xf32>
    %c0_258 = arith.constant 0 : index
    %c0_259 = arith.constant 0 : index
    %564 = vector.load %arg13[%c0_258, %c0_259] : memref<8x32xf32, #tpu.memory_space<vmem>>, vector<8x32xf32>
    %565 = arith.mulf %555, %564 : vector<8x32xf32>
    %566 = arith.mulf %549, %557 : vector<8x32xf32>
    %567 = arith.addf %565, %566 : vector<8x32xf32>
    %568 = math.tanh %567 : vector<8x32xf32>
    %569 = arith.mulf %563, %568 : vector<8x32xf32>
    %c0_260 = arith.constant 0 : index
    %c0_261 = arith.constant 0 : index
    %570 = vector.load %arg13[%c0_260, %c0_261] : memref<8x32xf32, #tpu.memory_space<vmem>>, vector<8x32xf32>
    tpu.vector_store %arg13[%c0_260, %c0_261], %567 {strides = array<i32>} : memref<8x32xf32, #tpu.memory_space<vmem>>, vector<8x32xf32>,
    %c0_262 = arith.constant 0 : index
    %c0_263 = arith.constant 0 : index
    %571 = vector.load %arg12[%c0_262, %c0_263] : memref<8x32xf32, #tpu.memory_space<vmem>>, vector<8x32xf32>
    tpu.vector_store %arg12[%c0_262, %c0_263], %569 {strides = array<i32>} : memref<8x32xf32, #tpu.memory_space<vmem>>, vector<8x32xf32>,
    %572 = arith.index_cast %c5_i32_249 : i32 to index
    %c0_264 = arith.constant 0 : index
    %c0_265 = arith.constant 0 : index
    %573 = vector.load %arg11[%572, %c0_264, %c0_265] : memref<8x8x32xf32, #tpu.memory_space<vmem>>, vector<1x8x32xf32>
    %574 = vector.shape_cast %573 : vector<1x8x32xf32> to vector<8x32xf32>
    %575 = vector.shape_cast %569 : vector<8x32xf32> to vector<1x8x32xf32>
    tpu.vector_store %arg11[%572, %c0_264, %c0_265], %575 {strides = array<i32>} : memref<8x8x32xf32, #tpu.memory_space<vmem>>, vector<1x8x32xf32>,
    %c6_i32_266 = arith.constant 6 : i32
    %576 = arith.index_cast %c6_i32_266 : i32 to index
    %c0_267 = arith.constant 0 : index
    %c0_268 = arith.constant 0 : index
    %577 = vector.load %arg10[%576, %c0_267, %c0_268] : memref<8x8x128xf32, #tpu.memory_space<vmem>>, vector<1x8x128xf32>
    %578 = vector.shape_cast %577 : vector<1x8x128xf32> to vector<8x128xf32>
    %c0_269 = arith.constant 0 : index
    %c0_270 = arith.constant 0 : index
    %579 = vector.load %arg12[%c0_269, %c0_270] : memref<8x32xf32, #tpu.memory_space<vmem>>, vector<8x32xf32>
    %580 = arith.truncf %579 : vector<8x32xf32> to vector<8x32xbf16>
    %cst_271 = arith.constant dense<0.000000e+00> : vector<8x128xf32>
    %581 = tpu.matmul %580, %341, %cst_271 {dimension_numbers = #tpu.dot_dimension_numbers<[1], [0], [0], [1], [0, 0, 1, 1], [], []>} : vector<8x32xbf16>, vector<32x128xbf16>, vector<8x128xf32> -> vector<8x128xf32>
    %582 = arith.addf %578, %581 : vector<8x128xf32>
    %583 = vector.extract_strided_slice %582 {offsets = [0, 0], sizes = [8, 32], strides = [1, 1]} : vector<8x128xf32> to vector<8x32xf32>
    %584 = arith.negf %583 : vector<8x32xf32>
    %585 = math.exp %584 : vector<8x32xf32>
    %cst_272 = arith.constant 1.000000e+00 : f32
    %586 = vector.broadcast %cst_272 : f32 to vector<8x32xf32>
    %587 = arith.addf %586, %585 : vector<8x32xf32>
    %588 = arith.divf %586, %587 : vector<8x32xf32>
    %589 = vector.extract_strided_slice %582 {offsets = [0, 32], sizes = [8, 32], strides = [1, 1]} : vector<8x128xf32> to vector<8x32xf32>
    %590 = arith.negf %589 : vector<8x32xf32>
    %591 = math.exp %590 : vector<8x32xf32>
    %cst_273 = arith.constant 1.000000e+00 : f32
    %592 = vector.broadcast %cst_273 : f32 to vector<8x32xf32>
    %593 = arith.addf %592, %591 : vector<8x32xf32>
    %594 = arith.divf %592, %593 : vector<8x32xf32>
    %595 = vector.extract_strided_slice %582 {offsets = [0, 64], sizes = [8, 32], strides = [1, 1]} : vector<8x128xf32> to vector<8x32xf32>
    %596 = math.tanh %595 : vector<8x32xf32>
    %597 = vector.extract_strided_slice %582 {offsets = [0, 96], sizes = [8, 32], strides = [1, 1]} : vector<8x128xf32> to vector<8x32xf32>
    %598 = arith.negf %597 : vector<8x32xf32>
    %599 = math.exp %598 : vector<8x32xf32>
    %cst_274 = arith.constant 1.000000e+00 : f32
    %600 = vector.broadcast %cst_274 : f32 to vector<8x32xf32>
    %601 = arith.addf %600, %599 : vector<8x32xf32>
    %602 = arith.divf %600, %601 : vector<8x32xf32>
    %c0_275 = arith.constant 0 : index
    %c0_276 = arith.constant 0 : index
    %603 = vector.load %arg13[%c0_275, %c0_276] : memref<8x32xf32, #tpu.memory_space<vmem>>, vector<8x32xf32>
    %604 = arith.mulf %594, %603 : vector<8x32xf32>
    %605 = arith.mulf %588, %596 : vector<8x32xf32>
    %606 = arith.addf %604, %605 : vector<8x32xf32>
    %607 = math.tanh %606 : vector<8x32xf32>
    %608 = arith.mulf %602, %607 : vector<8x32xf32>
    %c0_277 = arith.constant 0 : index
    %c0_278 = arith.constant 0 : index
    %609 = vector.load %arg13[%c0_277, %c0_278] : memref<8x32xf32, #tpu.memory_space<vmem>>, vector<8x32xf32>
    tpu.vector_store %arg13[%c0_277, %c0_278], %606 {strides = array<i32>} : memref<8x32xf32, #tpu.memory_space<vmem>>, vector<8x32xf32>,
    %c0_279 = arith.constant 0 : index
    %c0_280 = arith.constant 0 : index
    %610 = vector.load %arg12[%c0_279, %c0_280] : memref<8x32xf32, #tpu.memory_space<vmem>>, vector<8x32xf32>
    tpu.vector_store %arg12[%c0_279, %c0_280], %608 {strides = array<i32>} : memref<8x32xf32, #tpu.memory_space<vmem>>, vector<8x32xf32>,
    %611 = arith.index_cast %c6_i32_266 : i32 to index
    %c0_281 = arith.constant 0 : index
    %c0_282 = arith.constant 0 : index
    %612 = vector.load %arg11[%611, %c0_281, %c0_282] : memref<8x8x32xf32, #tpu.memory_space<vmem>>, vector<1x8x32xf32>
    %613 = vector.shape_cast %612 : vector<1x8x32xf32> to vector<8x32xf32>
    %614 = vector.shape_cast %608 : vector<8x32xf32> to vector<1x8x32xf32>
    tpu.vector_store %arg11[%611, %c0_281, %c0_282], %614 {strides = array<i32>} : memref<8x8x32xf32, #tpu.memory_space<vmem>>, vector<1x8x32xf32>,
    %c7_i32_283 = arith.constant 7 : i32
    %615 = arith.index_cast %c7_i32_283 : i32 to index
    %c0_284 = arith.constant 0 : index
    %c0_285 = arith.constant 0 : index
    %616 = vector.load %arg10[%615, %c0_284, %c0_285] : memref<8x8x128xf32, #tpu.memory_space<vmem>>, vector<1x8x128xf32>
    %617 = vector.shape_cast %616 : vector<1x8x128xf32> to vector<8x128xf32>
    %c0_286 = arith.constant 0 : index
    %c0_287 = arith.constant 0 : index
    %618 = vector.load %arg12[%c0_286, %c0_287] : memref<8x32xf32, #tpu.memory_space<vmem>>, vector<8x32xf32>
    %619 = arith.truncf %618 : vector<8x32xf32> to vector<8x32xbf16>
    %cst_288 = arith.constant dense<0.000000e+00> : vector<8x128xf32>
    %620 = tpu.matmul %619, %341, %cst_288 {dimension_numbers = #tpu.dot_dimension_numbers<[1], [0], [0], [1], [0, 0, 1, 1], [], []>} : vector<8x32xbf16>, vector<32x128xbf16>, vector<8x128xf32> -> vector<8x128xf32>
    %621 = arith.addf %617, %620 : vector<8x128xf32>
    %622 = vector.extract_strided_slice %621 {offsets = [0, 0], sizes = [8, 32], strides = [1, 1]} : vector<8x128xf32> to vector<8x32xf32>
    %623 = arith.negf %622 : vector<8x32xf32>
    %624 = math.exp %623 : vector<8x32xf32>
    %cst_289 = arith.constant 1.000000e+00 : f32
    %625 = vector.broadcast %cst_289 : f32 to vector<8x32xf32>
    %626 = arith.addf %625, %624 : vector<8x32xf32>
    %627 = arith.divf %625, %626 : vector<8x32xf32>
    %628 = vector.extract_strided_slice %621 {offsets = [0, 32], sizes = [8, 32], strides = [1, 1]} : vector<8x128xf32> to vector<8x32xf32>
    %629 = arith.negf %628 : vector<8x32xf32>
    %630 = math.exp %629 : vector<8x32xf32>
    %cst_290 = arith.constant 1.000000e+00 : f32
    %631 = vector.broadcast %cst_290 : f32 to vector<8x32xf32>
    %632 = arith.addf %631, %630 : vector<8x32xf32>
    %633 = arith.divf %631, %632 : vector<8x32xf32>
    %634 = vector.extract_strided_slice %621 {offsets = [0, 64], sizes = [8, 32], strides = [1, 1]} : vector<8x128xf32> to vector<8x32xf32>
    %635 = math.tanh %634 : vector<8x32xf32>
    %636 = vector.extract_strided_slice %621 {offsets = [0, 96], sizes = [8, 32], strides = [1, 1]} : vector<8x128xf32> to vector<8x32xf32>
    %637 = arith.negf %636 : vector<8x32xf32>
    %638 = math.exp %637 : vector<8x32xf32>
    %cst_291 = arith.constant 1.000000e+00 : f32
    %639 = vector.broadcast %cst_291 : f32 to vector<8x32xf32>
    %640 = arith.addf %639, %638 : vector<8x32xf32>
    %641 = arith.divf %639, %640 : vector<8x32xf32>
    %c0_292 = arith.constant 0 : index
    %c0_293 = arith.constant 0 : index
    %642 = vector.load %arg13[%c0_292, %c0_293] : memref<8x32xf32, #tpu.memory_space<vmem>>, vector<8x32xf32>
    %643 = arith.mulf %633, %642 : vector<8x32xf32>
    %644 = arith.mulf %627, %635 : vector<8x32xf32>
    %645 = arith.addf %643, %644 : vector<8x32xf32>
    %646 = math.tanh %645 : vector<8x32xf32>
    %647 = arith.mulf %641, %646 : vector<8x32xf32>
    %c0_294 = arith.constant 0 : index
    %c0_295 = arith.constant 0 : index
    %648 = vector.load %arg13[%c0_294, %c0_295] : memref<8x32xf32, #tpu.memory_space<vmem>>, vector<8x32xf32>
    tpu.vector_store %arg13[%c0_294, %c0_295], %645 {strides = array<i32>} : memref<8x32xf32, #tpu.memory_space<vmem>>, vector<8x32xf32>,
    %c0_296 = arith.constant 0 : index
    %c0_297 = arith.constant 0 : index
    %649 = vector.load %arg12[%c0_296, %c0_297] : memref<8x32xf32, #tpu.memory_space<vmem>>, vector<8x32xf32>
    tpu.vector_store %arg12[%c0_296, %c0_297], %647 {strides = array<i32>} : memref<8x32xf32, #tpu.memory_space<vmem>>, vector<8x32xf32>,
    %650 = arith.index_cast %c7_i32_283 : i32 to index
    %c0_298 = arith.constant 0 : index
    %c0_299 = arith.constant 0 : index
    %651 = vector.load %arg11[%650, %c0_298, %c0_299] : memref<8x8x32xf32, #tpu.memory_space<vmem>>, vector<1x8x32xf32>
    %652 = vector.shape_cast %651 : vector<1x8x32xf32> to vector<8x32xf32>
    %653 = vector.shape_cast %647 : vector<8x32xf32> to vector<1x8x32xf32>
    tpu.vector_store %arg11[%650, %c0_298, %c0_299], %653 {strides = array<i32>} : memref<8x8x32xf32, #tpu.memory_space<vmem>>, vector<1x8x32xf32>,
    %c8_i32_300 = arith.constant 8 : i32
    %c0_301 = arith.constant 0 : index
    %c0_302 = arith.constant 0 : index
    %c0_303 = arith.constant 0 : index
    %654 = vector.load %arg11[%c0_301, %c0_302, %c0_303] : memref<8x8x32xf32, #tpu.memory_space<vmem>>, vector<8x8x32xf32>
    %c0_304 = arith.constant 0 : index
    %c0_305 = arith.constant 0 : index
    %655 = vector.load %arg7[%c0_304, %c0_305] : memref<1x32xf32, #tpu.memory_space<vmem>>, vector<1x32xf32>
    %656 = vector.shape_cast %655 : vector<1x32xf32> to vector<1x1x32xf32>
    %657 = vector.broadcast %656 : vector<1x1x32xf32> to vector<8x8x32xf32>
    %658 = arith.mulf %654, %657 : vector<8x8x32xf32>
    %cst_306 = arith.constant dense<0.000000e+00> : vector<8x8xf32>
    %659 = vector.multi_reduction <add>, %658, %cst_306 [2] : vector<8x8x32xf32> to vector<8x8xf32>
    %c0_307 = arith.constant 0 : index
    %c0_308 = arith.constant 0 : index
    %660 = vector.load %arg8[%c0_307, %c0_308] : memref<1x1xf32, #tpu.memory_space<vmem>>, vector<1x1xf32>
    %661 = vector.broadcast %660 : vector<1x1xf32> to vector<8x8xf32>
    %662 = arith.addf %659, %661 : vector<8x8xf32>
    %663 = arith.negf %662 : vector<8x8xf32>
    %664 = math.exp %663 : vector<8x8xf32>
    %cst_309 = arith.constant 1.000000e+00 : f32
    %665 = vector.broadcast %cst_309 : f32 to vector<8x8xf32>
    %666 = arith.addf %665, %664 : vector<8x8xf32>
    %667 = arith.divf %665, %666 : vector<8x8xf32>
    %c0_310 = arith.constant 0 : index
    %c0_311 = arith.constant 0 : index
    %668 = vector.load %arg9[%c0_310, %c0_311] : memref<8x8xf32, #tpu.memory_space<vmem>>, vector<8x8xf32>
    tpu.vector_store %arg9[%c0_310, %c0_311], %667 {strides = array<i32>} : memref<8x8xf32, #tpu.memory_space<vmem>>, vector<8x8xf32>,
    return
  }
}

</mosaic_0001>

<llo_original>
// kernel: discriminator_forward.1
$region0: #{discriminator_forward.1}
  #allocation0 [shape = 'u32[]', space=smem, size = 0x4, offset = 0x4, fixed_abs, tag = 'smem constant byte address 0x4 - core index']
  #allocation1 [shape = 'u32[72,128]{1,0:T(1,128)}', space=vmem, size = 0x9000, scoped, tag = 'internal scratch']
  #allocation2 [shape = 'f32[8,8,128]{2,1,0:T(8,128)}', space=vmem, size = 0x8000, scoped, tag = 'scratch operand']
  #allocation3 [shape = 'f32[8,8,32]{2,1,0:T(8,128)}', space=vmem, size = 0x8000, scoped, tag = 'scratch operand']
  #allocation4 [shape = 'f32[8,32]{1,0:T(8,128)}', space=vmem, size = 0x1000, scoped, tag = 'scratch operand']
  #allocation5 [shape = 'f32[8,32]{1,0:T(8,128)}', space=vmem, size = 0x1000, scoped, tag = 'scratch operand']
  #allocation6 [shape = 'f32[1,1]{1,0:T(1,128)S(1)}', space=vmem, size = 0x200, scoped, tag = 'scoped memory for discriminator_forward.1']
  %s0 = inlined_call_operand.vmem [shape: f32[8,8,16], index: 0, kind: input, shape index: {}]
  %s1 = inlined_call_operand.vmem [shape: bf16[16,128], index: 1, kind: input, shape index: {}]
  %s2 = inlined_call_operand.vmem [shape: bf16[32,128], index: 2, kind: input, shape index: {}]
  %s3 = inlined_call_operand.vmem [shape: f32[1,128], index: 3, kind: input, shape index: {}]
  %s4 = inlined_call_operand.vmem [shape: bf16[32,128], index: 4, kind: input, shape index: {}]
  %s5 = inlined_call_operand.vmem [shape: bf16[32,128], index: 5, kind: input, shape index: {}]
  %s6 = inlined_call_operand.vmem [shape: f32[1,128], index: 6, kind: input, shape index: {}]
  %s7 = inlined_call_operand.vmem [shape: f32[1,32], index: 7, kind: input, shape index: {}]
  %s8 = inlined_call_operand.<no memory space> [shape: f32[1,1], index: 8, kind: input, shape index: {}]
  %s9 = inlined_call_operand.vmem [shape: f32[8,8], index: 9, kind: output, shape index: {}]
  %s10 = sld [smem:[#allocation0]]
  $region46: #{discriminator_forward.1} parent=0
    _
  %s12 = ssub.s32 1, %s10
  %s13 = scalar_select 0, %s12, %s10
  %v14 = vstv %s8
  %15 = vst [vmem:[#allocation6] sm:$0x1] %v14
  // Predicated region
  $region2: #{discriminator_forward.1} parent=0 // pred_check
    _
  $region3: #{discriminator_forward.1} parent=0 // pred_check_branch
    %17 = sbr.rel (0) target = $region5
  $region4: #{discriminator_forward.1} parent=0 // pred_region
    _
  $region5: #{discriminator_forward.1} parent=0 // pred_fallthru
    _
  // Predicated region
  $region6: #{discriminator_forward.1} parent=0 // pred_check
    _
  $region7: #{discriminator_forward.1} parent=0 // pred_check_branch
    %19 = sbr.rel (0) target = $region9
  $region8: #{discriminator_forward.1} parent=0 // pred_region
    _
  $region9: #{discriminator_forward.1} parent=0 // pred_fallthru
    _
  // Predicated region
  $region10: #{discriminator_forward.1} parent=0 // pred_check
    _
  $region11: #{discriminator_forward.1} parent=0 // pred_check_branch
    %21 = sbr.rel (0) target = $region13
  $region12: #{discriminator_forward.1} parent=0 // pred_region
    _
  $region13: #{discriminator_forward.1} parent=0 // pred_fallthru
    _
  // Predicated region
  $region14: #{discriminator_forward.1} parent=0 // pred_check
    _
  $region15: #{discriminator_forward.1} parent=0 // pred_check_branch
    %23 = sbr.rel (0) target = $region17
  $region16: #{discriminator_forward.1} parent=0 // pred_region
    _
  $region17: #{discriminator_forward.1} parent=0 // pred_fallthru
    _
  // Predicated region
  $region18: #{discriminator_forward.1} parent=0 // pred_check
    _
  $region19: #{discriminator_forward.1} parent=0 // pred_check_branch
    %25 = sbr.rel (0) target = $region21
  $region20: #{discriminator_forward.1} parent=0 // pred_region
    _
  $region21: #{discriminator_forward.1} parent=0 // pred_fallthru
    _
  // Predicated region
  $region22: #{discriminator_forward.1} parent=0 // pred_check
    _
  $region23: #{discriminator_forward.1} parent=0 // pred_check_branch
    %27 = sbr.rel (0) target = $region25
  $region24: #{discriminator_forward.1} parent=0 // pred_region
    _
  $region25: #{discriminator_forward.1} parent=0 // pred_fallthru
    _
  // Predicated region
  $region26: #{discriminator_forward.1} parent=0 // pred_check
    _
  $region27: #{discriminator_forward.1} parent=0 // pred_check_branch
    %29 = sbr.rel (0) target = $region29
  $region28: #{discriminator_forward.1} parent=0 // pred_region
    _
  $region29: #{discriminator_forward.1} parent=0 // pred_fallthru
    _
  // Predicated region
  $region30: #{discriminator_forward.1} parent=0 // pred_check
    _
  $region31: #{discriminator_forward.1} parent=0 // pred_check_branch
    %31 = sbr.rel (0) target = $region33
  $region32: #{discriminator_forward.1} parent=0 // pred_region
    _
  $region33: #{discriminator_forward.1} parent=0 // pred_fallthru
    _
  // Predicated region
  $region34: #{discriminator_forward.1} parent=0 // pred_check
    _
  $region35: #{discriminator_forward.1} parent=0 // pred_check_branch
    %33 = sbr.rel (0) target = $region37
  $region36: #{discriminator_forward.1} parent=0 // pred_region
    _
  $region37: #{discriminator_forward.1} parent=0 // pred_fallthru
    _
  %v35 = vld [vmem:[%s0] sm:$0xff]
  %v36 = vld [vmem:[%s0 + $0x8] sm:$0xff]
  %v37 = vld [vmem:[%s0 + $0x10] sm:$0xff]
  %v38 = vld [vmem:[%s0 + $0x18] sm:$0xff]
  %v39 = vld [vmem:[%s0 + $0x20] sm:$0xff]
  %v40 = vld [vmem:[%s0 + $0x28] sm:$0xff]
  %v41 = vld [vmem:[%s0 + $0x30] sm:$0xff]
  %v42 = vld [vmem:[%s0 + $0x38] sm:$0xff]
  %v43 = vpack.c.bf16 %v36, %v35
  %v44 = vpack.c.bf16 %v38, %v37
  %v45 = vpack.c.bf16 %v40, %v39
  %v46 = vpack.c.bf16 %v42, %v41
  %v47 = vld [vmem:[%s1] sm:$0xf]
  %v48 = vld [vmem:[%s1 + $0x4] sm:$0xf]
  %v49 = vld [vmem:[%s3] sm:$0x1]
  %v51 = vperm.slane %v49, 0
  %v55 = vunpack.c.l.b16 %v47
  %v56 = vunpack.c.l.b16 %v48
  %v57 = vpack.c.b16 %v56, %v55
  %vm59 = vcmask 130048
  %v61 = vsel %vm59, %v43, 0
  %v64 = vsel %vm59, %v44, 0
  %v67 = vsel %vm59, %v45, 0
  %v70 = vsel %vm59, %v46, 0
  %72 = vmatpush.bf16.msra.mxu0 0
  %73 = vmatpush.bf16.msra.mxu0 0
  %74 = vmatpush.bf16.msra.mxu0 0
  %75 = vmatpush.bf16.msra.mxu0 0
  %76 = vmatpush.bf16.msra.mxu0 0
  %77 = vmatpush.bf16.msra.mxu0 0
  %78 = vmatpush.bf16.msra.mxu0 0
  %79 = vmatpush.bf16.msra.mxu0 %v57
  %80 = vmatmul.bf16.gmra.mxu0 %v61
  %v81 = vpop.f32.mrf.mxu0
  %v82 = vadd.f32 %v51, %v81
  %v83 = vpop.f32.mrf.mxu0
  %v84 = vadd.f32 %v51, %v83
  %85 = vmatmul.bf16.gmra.mxu0 %v64
  %v86 = vpop.f32.mrf.mxu0
  %v87 = vadd.f32 %v51, %v86
  %v88 = vpop.f32.mrf.mxu0
  %v89 = vadd.f32 %v51, %v88
  %90 = vmatmul.bf16.gmra.mxu0 %v67
  %v91 = vpop.f32.mrf.mxu0
  %v92 = vadd.f32 %v51, %v91
  %v93 = vpop.f32.mrf.mxu0
  %v94 = vadd.f32 %v51, %v93
  %95 = vmatmul.bf16.gmra.mxu0 %v70
  %v96 = vpop.f32.mrf.mxu0
  %v97 = vadd.f32 %v51, %v96
  %v98 = vpop.f32.mrf.mxu0
  %v99 = vadd.f32 %v51, %v98
  %100 = vdwg.mxu0
  %101 = vst [vmem:[#allocation2] sm:$0xff] %v82
  %102 = vst [vmem:[#allocation2 + $0x8] sm:$0xff] %v84
  %103 = vst [vmem:[#allocation2 + $0x10] sm:$0xff] %v87
  %104 = vst [vmem:[#allocation2 + $0x18] sm:$0xff] %v89
  %105 = vst [vmem:[#allocation2 + $0x20] sm:$0xff] %v92
  %106 = vst [vmem:[#allocation2 + $0x28] sm:$0xff] %v94
  %107 = vst [vmem:[#allocation2 + $0x30] sm:$0xff] %v97
  %108 = vst [vmem:[#allocation2 + $0x38] sm:$0xff] %v99
  %vm109 = vcmask 261120
  %110 = vst.msk [vmem:[#allocation4] sm:$0xff] %vm109, 0.0
  %111 = vst.msk [vmem:[#allocation5] sm:$0xff] %vm109, 0.0
  %v112 = vld [vmem:[%s2] sm:$0xf]
  %v113 = vld [vmem:[%s2 + $0x4] sm:$0xf]
  %v114 = vld [vmem:[%s2 + $0x8] sm:$0xf]
  %v115 = vld [vmem:[%s2 + $0xc] sm:$0xf]
  %v116 = vld [vmem:[#allocation2] sm:$0xff]
  %v117 = vld [vmem:[#allocation4] sm:$0xff]
  %v118 = vpack.c.bf16 %v117, %v117
  %v123 = vunpack.c.l.b16 %v112
  %v124 = vunpack.c.l.b16 %v113
  %v125 = vunpack.c.l.b16 %v114
  %v126 = vunpack.c.l.b16 %v115
  %v127 = vpack.c.b16 %v124, %v123
  %v128 = vpack.c.b16 %v126, %v125
  %v132 = vsel %vm109, %v118, 0
  %134 = vmatpush.bf16.msra.mxu0 0
  %135 = vmatpush.bf16.msra.mxu0 0
  %136 = vmatpush.bf16.msra.mxu0 0
  %137 = vmatpush.bf16.msra.mxu0 0
  %138 = vmatpush.bf16.msra.mxu0 0
  %139 = vmatpush.bf16.msra.mxu0 0
  %140 = vmatpush.bf16.msra.mxu0 %v128
  %141 = vmatpush.bf16.msra.mxu0 %v127
  %142 = vmatmul.bf16.gmra.mxu0 %v132
  %v143 = vpop.f32.mrf.mxu0
  %v144 = vadd.f32 0.0, %v143
  %v145 = vpop.f32.mrf.mxu0
  %146 = vdwg.mxu0
  %v147 = vadd.f32 %v116, %v144
  %v148 = vxor.u32 %v147, 2147483648
  %v149 = vmul.f32 %v148, 1.442695
  %v150 = vpow.pop %v149
  %v151 = vadd.f32 %v150, 1.0
  %v152 = vrcp.pop %v151
  %v153 = vmul.f32 %v151, %v152
  %v154 = vsub.f32 1.0, %v153
  %v155 = vmul.f32 %v152, %v154
  %v156 = vadd.f32 %v152, %v155
  %vm157 = vweird.f32 %v151
  %vm158 = vweird.f32 %v152
  %vm159 = vmor %vm157, %vm158
  %v160 = vsel %vm159, %v152, %v156
  %v161 = vand.u32 2147483647, %v151
  %vm162 = vcmp.eq.f32.partialorder %v161, 8.507059e+37
  %v163 = vand.u32 %v151, 2147483648
  %v164 = vor.u32 1.1754944e-38, %v163
  %v165 = vsel %vm162, %v164, %v160
  %v166 = vmul.f32 1.0, %v165
  %v167 = vtanh.pop %v147
  %v168 = vld [vmem:[#allocation5] sm:$0xff]
  %170 = vrot.lane.b32.xlu0 %v168, 32
  %v171 = vpop.permute.xlu0 %170
  %v173 = vmul.f32 %v166, %v171
  %175 = vrot.lane.b32.xlu0 %v167, 64
  %v176 = vpop.permute.xlu0 %175
  %v178 = vmul.f32 %v166, %v176
  %180 = vrot.lane.b32.xlu0 %v178, 32
  %v181 = vpop.permute.xlu0 %180
  %v183 = vadd.f32 %v173, %v181
  %v184 = vtanh.pop %v183
  %186 = vrot.lane.b32.xlu0 %v184, 64
  %v187 = vpop.permute.xlu0 %186
  %v189 = vmul.f32 %v166, %v187
  %191 = vrot.lane.b32.xlu0 %v183, 96
  %v192 = vpop.permute.xlu0 %191
  %194 = vst.msk [vmem:[#allocation5] sm:$0xff] %vm109, %v192
  %196 = vrot.lane.b32.xlu0 %v189, 32
  %v197 = vpop.permute.xlu0 %196
  %199 = vst.msk [vmem:[#allocation4] sm:$0xff] %vm109, %v197
  %200 = vst.msk [vmem:[#allocation3] sm:$0xff] %vm109, %v197
  %s201 = scalar_lea.vmem [#allocation2], 8
  %v202 = vld [vmem:[%s201] sm:$0xff]
  %v203 = vld [vmem:[#allocation4] sm:$0xff]
  %v204 = vpack.c.bf16 %v203, %v203
  %v206 = vsel %vm109, %v204, 0
  %208 = vmatpush.bf16.msra.mxu0 0
  %209 = vmatpush.bf16.msra.mxu0 0
  %210 = vmatpush.bf16.msra.mxu0 0
  %211 = vmatpush.bf16.msra.mxu0 0
  %212 = vmatpush.bf16.msra.mxu0 0
  %213 = vmatpush.bf16.msra.mxu0 0
  %214 = vmatpush.bf16.msra.mxu0 %v128
  %215 = vmatpush.bf16.msra.mxu0 %v127
  %216 = vmatmul.bf16.gmra.mxu0 %v206
  %v217 = vpop.f32.mrf.mxu0
  %v218 = vadd.f32 0.0, %v217
  %v219 = vpop.f32.mrf.mxu0
  %220 = vdwg.mxu0
  %v221 = vadd.f32 %v202, %v218
  %v222 = vxor.u32 %v221, 2147483648
  %v223 = vmul.f32 %v222, 1.442695
  %v224 = vpow.pop %v223
  %v225 = vadd.f32 %v224, 1.0
  %v226 = vrcp.pop %v225
  %v227 = vmul.f32 %v225, %v226
  %v228 = vsub.f32 1.0, %v227
  %v229 = vmul.f32 %v226, %v228
  %v230 = vadd.f32 %v226, %v229
  %vm231 = vweird.f32 %v225
  %vm232 = vweird.f32 %v226
  %vm233 = vmor %vm231, %vm232
  %v234 = vsel %vm233, %v226, %v230
  %v235 = vand.u32 2147483647, %v225
  %vm236 = vcmp.eq.f32.partialorder %v235, 8.507059e+37
  %v237 = vand.u32 %v225, 2147483648
  %v238 = vor.u32 1.1754944e-38, %v237
  %v239 = vsel %vm236, %v238, %v234
  %v240 = vmul.f32 1.0, %v239
  %v241 = vtanh.pop %v221
  %v242 = vld [vmem:[#allocation5] sm:$0xff]
  %244 = vrot.lane.b32.xlu0 %v242, 32
  %v245 = vpop.permute.xlu0 %244
  %v247 = vmul.f32 %v240, %v245
  %249 = vrot.lane.b32.xlu0 %v241, 64
  %v250 = vpop.permute.xlu0 %249
  %v252 = vmul.f32 %v240, %v250
  %254 = vrot.lane.b32.xlu0 %v252, 32
  %v255 = vpop.permute.xlu0 %254
  %v257 = vadd.f32 %v247, %v255
  %v258 = vtanh.pop %v257
  %260 = vrot.lane.b32.xlu0 %v258, 64
  %v261 = vpop.permute.xlu0 %260
  %v263 = vmul.f32 %v240, %v261
  %265 = vrot.lane.b32.xlu0 %v257, 96
  %v266 = vpop.permute.xlu0 %265
  %268 = vst.msk [vmem:[#allocation5] sm:$0xff] %vm109, %v266
  %270 = vrot.lane.b32.xlu0 %v263, 32
  %v271 = vpop.permute.xlu0 %270
  %273 = vst.msk [vmem:[#allocation4] sm:$0xff] %vm109, %v271
  %s274 = scalar_lea.vmem [#allocation3], 8
  %275 = vst.msk [vmem:[%s274] sm:$0xff] %vm109, %v271
  %s276 = scalar_lea.vmem [#allocation2], 16
  %v277 = vld [vmem:[%s276] sm:$0xff]
  %v278 = vld [vmem:[#allocation4] sm:$0xff]
  %v279 = vpack.c.bf16 %v278, %v278
  %v281 = vsel %vm109, %v279, 0
  %283 = vmatpush.bf16.msra.mxu0 0
  %284 = vmatpush.bf16.msra.mxu0 0
  %285 = vmatpush.bf16.msra.mxu0 0
  %286 = vmatpush.bf16.msra.mxu0 0
  %287 = vmatpush.bf16.msra.mxu0 0
  %288 = vmatpush.bf16.msra.mxu0 0
  %289 = vmatpush.bf16.msra.mxu0 %v128
  %290 = vmatpush.bf16.msra.mxu0 %v127
  %291 = vmatmul.bf16.gmra.mxu0 %v281
  %v292 = vpop.f32.mrf.mxu0
  %v293 = vadd.f32 0.0, %v292
  %v294 = vpop.f32.mrf.mxu0
  %295 = vdwg.mxu0
  %v296 = vadd.f32 %v277, %v293
  %v297 = vxor.u32 %v296, 2147483648
  %v298 = vmul.f32 %v297, 1.442695
  %v299 = vpow.pop %v298
  %v300 = vadd.f32 %v299, 1.0
  %v301 = vrcp.pop %v300
  %v302 = vmul.f32 %v300, %v301
  %v303 = vsub.f32 1.0, %v302
  %v304 = vmul.f32 %v301, %v303
  %v305 = vadd.f32 %v301, %v304
  %vm306 = vweird.f32 %v300
  %vm307 = vweird.f32 %v301
  %vm308 = vmor %vm306, %vm307
  %v309 = vsel %vm308, %v301, %v305
  %v310 = vand.u32 2147483647, %v300
  %vm311 = vcmp.eq.f32.partialorder %v310, 8.507059e+37
  %v312 = vand.u32 %v300, 2147483648
  %v313 = vor.u32 1.1754944e-38, %v312
  %v314 = vsel %vm311, %v313, %v309
  %v315 = vmul.f32 1.0, %v314
  %v316 = vtanh.pop %v296
  %v317 = vld [vmem:[#allocation5] sm:$0xff]
  %319 = vrot.lane.b32.xlu0 %v317, 32
  %v320 = vpop.permute.xlu0 %319
  %v322 = vmul.f32 %v315, %v320
  %324 = vrot.lane.b32.xlu0 %v316, 64
  %v325 = vpop.permute.xlu0 %324
  %v327 = vmul.f32 %v315, %v325
  %329 = vrot.lane.b32.xlu0 %v327, 32
  %v330 = vpop.permute.xlu0 %329
  %v332 = vadd.f32 %v322, %v330
  %v333 = vtanh.pop %v332
  %335 = vrot.lane.b32.xlu0 %v333, 64
  %v336 = vpop.permute.xlu0 %335
  %v338 = vmul.f32 %v315, %v336
  %340 = vrot.lane.b32.xlu0 %v332, 96
  %v341 = vpop.permute.xlu0 %340
  %343 = vst.msk [vmem:[#allocation5] sm:$0xff] %vm109, %v341
  %345 = vrot.lane.b32.xlu0 %v338, 32
  %v346 = vpop.permute.xlu0 %345
  %348 = vst.msk [vmem:[#allocation4] sm:$0xff] %vm109, %v346
  %s349 = scalar_lea.vmem [#allocation3], 16
  %350 = vst.msk [vmem:[%s349] sm:$0xff] %vm109, %v346
  %s351 = scalar_lea.vmem [#allocation2], 24
  %v352 = vld [vmem:[%s351] sm:$0xff]
  %v353 = vld [vmem:[#allocation4] sm:$0xff]
  %v354 = vpack.c.bf16 %v353, %v353
  %v356 = vsel %vm109, %v354, 0
  %358 = vmatpush.bf16.msra.mxu0 0
  %359 = vmatpush.bf16.msra.mxu0 0
  %360 = vmatpush.bf16.msra.mxu0 0
  %361 = vmatpush.bf16.msra.mxu0 0
  %362 = vmatpush.bf16.msra.mxu0 0
  %363 = vmatpush.bf16.msra.mxu0 0
  %364 = vmatpush.bf16.msra.mxu0 %v128
  %365 = vmatpush.bf16.msra.mxu0 %v127
  %366 = vmatmul.bf16.gmra.mxu0 %v356
  %v367 = vpop.f32.mrf.mxu0
  %v368 = vadd.f32 0.0, %v367
  %v369 = vpop.f32.mrf.mxu0
  %370 = vdwg.mxu0
  %v371 = vadd.f32 %v352, %v368
  %v372 = vxor.u32 %v371, 2147483648
  %v373 = vmul.f32 %v372, 1.442695
  %v374 = vpow.pop %v373
  %v375 = vadd.f32 %v374, 1.0
  %v376 = vrcp.pop %v375
  %v377 = vmul.f32 %v375, %v376
  %v378 = vsub.f32 1.0, %v377
  %v379 = vmul.f32 %v376, %v378
  %v380 = vadd.f32 %v376, %v379
  %vm381 = vweird.f32 %v375
  %vm382 = vweird.f32 %v376
  %vm383 = vmor %vm381, %vm382
  %v384 = vsel %vm383, %v376, %v380
  %v385 = vand.u32 2147483647, %v375
  %vm386 = vcmp.eq.f32.partialorder %v385, 8.507059e+37
  %v387 = vand.u32 %v375, 2147483648
  %v388 = vor.u32 1.1754944e-38, %v387
  %v389 = vsel %vm386, %v388, %v384
  %v390 = vmul.f32 1.0, %v389
  %v391 = vtanh.pop %v371
  %v392 = vld [vmem:[#allocation5] sm:$0xff]
  %394 = vrot.lane.b32.xlu0 %v392, 32
  %v395 = vpop.permute.xlu0 %394
  %v397 = vmul.f32 %v390, %v395
  %399 = vrot.lane.b32.xlu0 %v391, 64
  %v400 = vpop.permute.xlu0 %399
  %v402 = vmul.f32 %v390, %v400
  %404 = vrot.lane.b32.xlu0 %v402, 32
  %v405 = vpop.permute.xlu0 %404
  %v407 = vadd.f32 %v397, %v405
  %v408 = vtanh.pop %v407
  %410 = vrot.lane.b32.xlu0 %v408, 64
  %v411 = vpop.permute.xlu0 %410
  %v413 = vmul.f32 %v390, %v411
  %415 = vrot.lane.b32.xlu0 %v407, 96
  %v416 = vpop.permute.xlu0 %415
  %418 = vst.msk [vmem:[#allocation5] sm:$0xff] %vm109, %v416
  %420 = vrot.lane.b32.xlu0 %v413, 32
  %v421 = vpop.permute.xlu0 %420
  %423 = vst.msk [vmem:[#allocation4] sm:$0xff] %vm109, %v421
  %s424 = scalar_lea.vmem [#allocation3], 24
  %425 = vst.msk [vmem:[%s424] sm:$0xff] %vm109, %v421
  %s426 = scalar_lea.vmem [#allocation2], 32
  %v427 = vld [vmem:[%s426] sm:$0xff]
  %v428 = vld [vmem:[#allocation4] sm:$0xff]
  %v429 = vpack.c.bf16 %v428, %v428
  %v431 = vsel %vm109, %v429, 0
  %433 = vmatpush.bf16.msra.mxu0 0
  %434 = vmatpush.bf16.msra.mxu0 0
  %435 = vmatpush.bf16.msra.mxu0 0
  %436 = vmatpush.bf16.msra.mxu0 0
  %437 = vmatpush.bf16.msra.mxu0 0
  %438 = vmatpush.bf16.msra.mxu0 0
  %439 = vmatpush.bf16.msra.mxu0 %v128
  %440 = vmatpush.bf16.msra.mxu0 %v127
  %441 = vmatmul.bf16.gmra.mxu0 %v431
  %v442 = vpop.f32.mrf.mxu0
  %v443 = vadd.f32 0.0, %v442
  %v444 = vpop.f32.mrf.mxu0
  %445 = vdwg.mxu0
  %v446 = vadd.f32 %v427, %v443
  %v447 = vxor.u32 %v446, 2147483648
  %v448 = vmul.f32 %v447, 1.442695
  %v449 = vpow.pop %v448
  %v450 = vadd.f32 %v449, 1.0
  %v451 = vrcp.pop %v450
  %v452 = vmul.f32 %v450, %v451
  %v453 = vsub.f32 1.0, %v452
  %v454 = vmul.f32 %v451, %v453
  %v455 = vadd.f32 %v451, %v454
  %vm456 = vweird.f32 %v450
  %vm457 = vweird.f32 %v451
  %vm458 = vmor %vm456, %vm457
  %v459 = vsel %vm458, %v451, %v455
  %v460 = vand.u32 2147483647, %v450
  %vm461 = vcmp.eq.f32.partialorder %v460, 8.507059e+37
  %v462 = vand.u32 %v450, 2147483648
  %v463 = vor.u32 1.1754944e-38, %v462
  %v464 = vsel %vm461, %v463, %v459
  %v465 = vmul.f32 1.0, %v464
  %v466 = vtanh.pop %v446
  %v467 = vld [vmem:[#allocation5] sm:$0xff]
  %469 = vrot.lane.b32.xlu0 %v467, 32
  %v470 = vpop.permute.xlu0 %469
  %v472 = vmul.f32 %v465, %v470
  %474 = vrot.lane.b32.xlu0 %v466, 64
  %v475 = vpop.permute.xlu0 %474
  %v477 = vmul.f32 %v465, %v475
  %479 = vrot.lane.b32.xlu0 %v477, 32
  %v480 = vpop.permute.xlu0 %479
  %v482 = vadd.f32 %v472, %v480
  %v483 = vtanh.pop %v482
  %485 = vrot.lane.b32.xlu0 %v483, 64
  %v486 = vpop.permute.xlu0 %485
  %v488 = vmul.f32 %v465, %v486
  %490 = vrot.lane.b32.xlu0 %v482, 96
  %v491 = vpop.permute.xlu0 %490
  %493 = vst.msk [vmem:[#allocation5] sm:$0xff] %vm109, %v491
  %495 = vrot.lane.b32.xlu0 %v488, 32
  %v496 = vpop.permute.xlu0 %495
  %498 = vst.msk [vmem:[#allocation4] sm:$0xff] %vm109, %v496
  %s499 = scalar_lea.vmem [#allocation3], 32
  %500 = vst.msk [vmem:[%s499] sm:$0xff] %vm109, %v496
  %s501 = scalar_lea.vmem [#allocation2], 40
  %v502 = vld [vmem:[%s501] sm:$0xff]
  %v503 = vld [vmem:[#allocation4] sm:$0xff]
  %v504 = vpack.c.bf16 %v503, %v503
  %v506 = vsel %vm109, %v504, 0
  %508 = vmatpush.bf16.msra.mxu0 0
  %509 = vmatpush.bf16.msra.mxu0 0
  %510 = vmatpush.bf16.msra.mxu0 0
  %511 = vmatpush.bf16.msra.mxu0 0
  %512 = vmatpush.bf16.msra.mxu0 0
  %513 = vmatpush.bf16.msra.mxu0 0
  %514 = vmatpush.bf16.msra.mxu0 %v128
  %515 = vmatpush.bf16.msra.mxu0 %v127
  %516 = vmatmul.bf16.gmra.mxu0 %v506
  %v517 = vpop.f32.mrf.mxu0
  %v518 = vadd.f32 0.0, %v517
  %v519 = vpop.f32.mrf.mxu0
  %520 = vdwg.mxu0
  %v521 = vadd.f32 %v502, %v518
  %v522 = vxor.u32 %v521, 2147483648
  %v523 = vmul.f32 %v522, 1.442695
  %v524 = vpow.pop %v523
  %v525 = vadd.f32 %v524, 1.0
  %v526 = vrcp.pop %v525
  %v527 = vmul.f32 %v525, %v526
  %v528 = vsub.f32 1.0, %v527
  %v529 = vmul.f32 %v526, %v528
  %v530 = vadd.f32 %v526, %v529
  %vm531 = vweird.f32 %v525
  %vm532 = vweird.f32 %v526
  %vm533 = vmor %vm531, %vm532
  %v534 = vsel %vm533, %v526, %v530
  %v535 = vand.u32 2147483647, %v525
  %vm536 = vcmp.eq.f32.partialorder %v535, 8.507059e+37
  %v537 = vand.u32 %v525, 2147483648
  %v538 = vor.u32 1.1754944e-38, %v537
  %v539 = vsel %vm536, %v538, %v534
  %v540 = vmul.f32 1.0, %v539
  %v541 = vtanh.pop %v521
  %v542 = vld [vmem:[#allocation5] sm:$0xff]
  %544 = vrot.lane.b32.xlu0 %v542, 32
  %v545 = vpop.permute.xlu0 %544
  %v547 = vmul.f32 %v540, %v545
  %549 = vrot.lane.b32.xlu0 %v541, 64
  %v550 = vpop.permute.xlu0 %549
  %v552 = vmul.f32 %v540, %v550
  %554 = vrot.lane.b32.xlu0 %v552, 32
  %v555 = vpop.permute.xlu0 %554
  %v557 = vadd.f32 %v547, %v555
  %v558 = vtanh.pop %v557
  %560 = vrot.lane.b32.xlu0 %v558, 64
  %v561 = vpop.permute.xlu0 %560
  %v563 = vmul.f32 %v540, %v561
  %565 = vrot.lane.b32.xlu0 %v557, 96
  %v566 = vpop.permute.xlu0 %565
  %568 = vst.msk [vmem:[#allocation5] sm:$0xff] %vm109, %v566
  %570 = vrot.lane.b32.xlu0 %v563, 32
  %v571 = vpop.permute.xlu0 %570
  %573 = vst.msk [vmem:[#allocation4] sm:$0xff] %vm109, %v571
  %s574 = scalar_lea.vmem [#allocation3], 40
  %575 = vst.msk [vmem:[%s574] sm:$0xff] %vm109, %v571
  %s576 = scalar_lea.vmem [#allocation2], 48
  %v577 = vld [vmem:[%s576] sm:$0xff]
  %v578 = vld [vmem:[#allocation4] sm:$0xff]
  %v579 = vpack.c.bf16 %v578, %v578
  %v581 = vsel %vm109, %v579, 0
  %583 = vmatpush.bf16.msra.mxu0 0
  %584 = vmatpush.bf16.msra.mxu0 0
  %585 = vmatpush.bf16.msra.mxu0 0
  %586 = vmatpush.bf16.msra.mxu0 0
  %587 = vmatpush.bf16.msra.mxu0 0
  %588 = vmatpush.bf16.msra.mxu0 0
  %589 = vmatpush.bf16.msra.mxu0 %v128
  %590 = vmatpush.bf16.msra.mxu0 %v127
  %591 = vmatmul.bf16.gmra.mxu0 %v581
  %v592 = vpop.f32.mrf.mxu0
  %v593 = vadd.f32 0.0, %v592
  %v594 = vpop.f32.mrf.mxu0
  %595 = vdwg.mxu0
  %v596 = vadd.f32 %v577, %v593
  %v597 = vxor.u32 %v596, 2147483648
  %v598 = vmul.f32 %v597, 1.442695
  %v599 = vpow.pop %v598
  %v600 = vadd.f32 %v599, 1.0
  %v601 = vrcp.pop %v600
  %v602 = vmul.f32 %v600, %v601
  %v603 = vsub.f32 1.0, %v602
  %v604 = vmul.f32 %v601, %v603
  %v605 = vadd.f32 %v601, %v604
  %vm606 = vweird.f32 %v600
  %vm607 = vweird.f32 %v601
  %vm608 = vmor %vm606, %vm607
  %v609 = vsel %vm608, %v601, %v605
  %v610 = vand.u32 2147483647, %v600
  %vm611 = vcmp.eq.f32.partialorder %v610, 8.507059e+37
  %v612 = vand.u32 %v600, 2147483648
  %v613 = vor.u32 1.1754944e-38, %v612
  %v614 = vsel %vm611, %v613, %v609
  %v615 = vmul.f32 1.0, %v614
  %v616 = vtanh.pop %v596
  %v617 = vld [vmem:[#allocation5] sm:$0xff]
  %619 = vrot.lane.b32.xlu0 %v617, 32
  %v620 = vpop.permute.xlu0 %619
  %v622 = vmul.f32 %v615, %v620
  %624 = vrot.lane.b32.xlu0 %v616, 64
  %v625 = vpop.permute.xlu0 %624
  %v627 = vmul.f32 %v615, %v625
  %629 = vrot.lane.b32.xlu0 %v627, 32
  %v630 = vpop.permute.xlu0 %629
  %v632 = vadd.f32 %v622, %v630
  %v633 = vtanh.pop %v632
  %635 = vrot.lane.b32.xlu0 %v633, 64
  %v636 = vpop.permute.xlu0 %635
  %v638 = vmul.f32 %v615, %v636
  %640 = vrot.lane.b32.xlu0 %v632, 96
  %v641 = vpop.permute.xlu0 %640
  %643 = vst.msk [vmem:[#allocation5] sm:$0xff] %vm109, %v641
  %645 = vrot.lane.b32.xlu0 %v638, 32
  %v646 = vpop.permute.xlu0 %645
  %648 = vst.msk [vmem:[#allocation4] sm:$0xff] %vm109, %v646
  %s649 = scalar_lea.vmem [#allocation3], 48
  %650 = vst.msk [vmem:[%s649] sm:$0xff] %vm109, %v646
  %s651 = scalar_lea.vmem [#allocation2], 56
  %v652 = vld [vmem:[%s651] sm:$0xff]
  %v653 = vld [vmem:[#allocation4] sm:$0xff]
  %v654 = vpack.c.bf16 %v653, %v653
  %v656 = vsel %vm109, %v654, 0
  %658 = vmatpush.bf16.msra.mxu0 0
  %659 = vmatpush.bf16.msra.mxu0 0
  %660 = vmatpush.bf16.msra.mxu0 0
  %661 = vmatpush.bf16.msra.mxu0 0
  %662 = vmatpush.bf16.msra.mxu0 0
  %663 = vmatpush.bf16.msra.mxu0 0
  %664 = vmatpush.bf16.msra.mxu0 %v128
  %665 = vmatpush.bf16.msra.mxu0 %v127
  %666 = vmatmul.bf16.gmra.mxu0 %v656
  %v667 = vpop.f32.mrf.mxu0
  %v668 = vadd.f32 0.0, %v667
  %v669 = vpop.f32.mrf.mxu0
  %670 = vdwg.mxu0
  %v671 = vadd.f32 %v652, %v668
  %v672 = vxor.u32 %v671, 2147483648
  %v673 = vmul.f32 %v672, 1.442695
  %v674 = vpow.pop %v673
  %v675 = vadd.f32 %v674, 1.0
  %v676 = vrcp.pop %v675
  %v677 = vmul.f32 %v675, %v676
  %v678 = vsub.f32 1.0, %v677
  %v679 = vmul.f32 %v676, %v678
  %v680 = vadd.f32 %v676, %v679
  %vm681 = vweird.f32 %v675
  %vm682 = vweird.f32 %v676
  %vm683 = vmor %vm681, %vm682
  %v684 = vsel %vm683, %v676, %v680
  %v685 = vand.u32 2147483647, %v675
  %vm686 = vcmp.eq.f32.partialorder %v685, 8.507059e+37
  %v687 = vand.u32 %v675, 2147483648
  %v688 = vor.u32 1.1754944e-38, %v687
  %v689 = vsel %vm686, %v688, %v684
  %v690 = vmul.f32 1.0, %v689
  %v691 = vtanh.pop %v671
  %v692 = vld [vmem:[#allocation5] sm:$0xff]
  %694 = vrot.lane.b32.xlu0 %v692, 32
  %v695 = vpop.permute.xlu0 %694
  %v697 = vmul.f32 %v690, %v695
  %699 = vrot.lane.b32.xlu0 %v691, 64
  %v700 = vpop.permute.xlu0 %699
  %v702 = vmul.f32 %v690, %v700
  %704 = vrot.lane.b32.xlu0 %v702, 32
  %v705 = vpop.permute.xlu0 %704
  %v707 = vadd.f32 %v697, %v705
  %v708 = vtanh.pop %v707
  %710 = vrot.lane.b32.xlu0 %v708, 64
  %v711 = vpop.permute.xlu0 %710
  %v713 = vmul.f32 %v690, %v711
  %715 = vrot.lane.b32.xlu0 %v707, 96
  %v716 = vpop.permute.xlu0 %715
  %718 = vst.msk [vmem:[#allocation5] sm:$0xff] %vm109, %v716
  %720 = vrot.lane.b32.xlu0 %v713, 32
  %v721 = vpop.permute.xlu0 %720
  %723 = vst.msk [vmem:[#allocation4] sm:$0xff] %vm109, %v721
  %s724 = scalar_lea.vmem [#allocation3], 56
  %725 = vst.msk [vmem:[%s724] sm:$0xff] %vm109, %v721
  %v726 = vld [vmem:[#allocation3] sm:$0xff]
  %v727 = vld [vmem:[#allocation3 + $0x8] sm:$0xff]
  %v728 = vld [vmem:[#allocation3 + $0x10] sm:$0xff]
  %v729 = vld [vmem:[#allocation3 + $0x18] sm:$0xff]
  %v730 = vld [vmem:[#allocation3 + $0x20] sm:$0xff]
  %v731 = vld [vmem:[#allocation3 + $0x28] sm:$0xff]
  %v732 = vld [vmem:[#allocation3 + $0x30] sm:$0xff]
  %v733 = vld [vmem:[#allocation3 + $0x38] sm:$0xff]
  %v734 = vpack.c.bf16 %v727, %v726
  %v735 = vpack.c.bf16 %v729, %v728
  %v736 = vpack.c.bf16 %v731, %v730
  %v737 = vpack.c.bf16 %v733, %v732
  %v738 = vld [vmem:[%s4] sm:$0xf]
  %v739 = vld [vmem:[%s4 + $0x4] sm:$0xf]
  %v740 = vld [vmem:[%s4 + $0x8] sm:$0xf]
  %v741 = vld [vmem:[%s4 + $0xc] sm:$0xf]
  %v742 = vld [vmem:[%s6] sm:$0x1]
  %v744 = vperm.slane %v742, 0
  %v750 = vunpack.c.l.b16 %v738
  %v751 = vunpack.c.l.b16 %v739
  %v752 = vunpack.c.l.b16 %v740
  %v753 = vunpack.c.l.b16 %v741
  %v754 = vpack.c.b16 %v751, %v750
  %v755 = vpack.c.b16 %v753, %v752
  %v759 = vsel %vm109, %v734, 0
  %v762 = vsel %vm109, %v735, 0
  %v765 = vsel %vm109, %v736, 0
  %v768 = vsel %vm109, %v737, 0
  %770 = vmatpush.bf16.msra.mxu0 0
  %771 = vmatpush.bf16.msra.mxu0 0
  %772 = vmatpush.bf16.msra.mxu0 0
  %773 = vmatpush.bf16.msra.mxu0 0
  %774 = vmatpush.bf16.msra.mxu0 0
  %775 = vmatpush.bf16.msra.mxu0 0
  %776 = vmatpush.bf16.msra.mxu0 %v755
  %777 = vmatpush.bf16.msra.mxu0 %v754
  %778 = vmatmul.bf16.gmra.mxu0 %v759
  %v779 = vpop.f32.mrf.mxu0
  %v780 = vadd.f32 %v744, %v779
  %v781 = vpop.f32.mrf.mxu0
  %v782 = vadd.f32 %v744, %v781
  %783 = vmatmul.bf16.gmra.mxu0 %v762
  %v784 = vpop.f32.mrf.mxu0
  %v785 = vadd.f32 %v744, %v784
  %v786 = vpop.f32.mrf.mxu0
  %v787 = vadd.f32 %v744, %v786
  %788 = vmatmul.bf16.gmra.mxu0 %v765
  %v789 = vpop.f32.mrf.mxu0
  %v790 = vadd.f32 %v744, %v789
  %v791 = vpop.f32.mrf.mxu0
  %v792 = vadd.f32 %v744, %v791
  %793 = vmatmul.bf16.gmra.mxu0 %v768
  %v794 = vpop.f32.mrf.mxu0
  %v795 = vadd.f32 %v744, %v794
  %v796 = vpop.f32.mrf.mxu0
  %v797 = vadd.f32 %v744, %v796
  %798 = vdwg.mxu0
  %799 = vst [vmem:[#allocation2] sm:$0xff] %v780
  %800 = vst [vmem:[#allocation2 + $0x8] sm:$0xff] %v782
  %801 = vst [vmem:[#allocation2 + $0x10] sm:$0xff] %v785
  %802 = vst [vmem:[#allocation2 + $0x18] sm:$0xff] %v787
  %803 = vst [vmem:[#allocation2 + $0x20] sm:$0xff] %v790
  %804 = vst [vmem:[#allocation2 + $0x28] sm:$0xff] %v792
  %805 = vst [vmem:[#allocation2 + $0x30] sm:$0xff] %v795
  %806 = vst [vmem:[#allocation2 + $0x38] sm:$0xff] %v797
  %807 = vst.msk [vmem:[#allocation4] sm:$0xff] %vm109, 0.0
  %808 = vst.msk [vmem:[#allocation5] sm:$0xff] %vm109, 0.0
  %v809 = vld [vmem:[%s5] sm:$0xf]
  %v810 = vld [vmem:[%s5 + $0x4] sm:$0xf]
  %v811 = vld [vmem:[%s5 + $0x8] sm:$0xf]
  %v812 = vld [vmem:[%s5 + $0xc] sm:$0xf]
  %v813 = vld [vmem:[#allocation2] sm:$0xff]
  %v814 = vld [vmem:[#allocation4] sm:$0xff]
  %v815 = vpack.c.bf16 %v814, %v814
  %v820 = vunpack.c.l.b16 %v809
  %v821 = vunpack.c.l.b16 %v810
  %v822 = vunpack.c.l.b16 %v811
  %v823 = vunpack.c.l.b16 %v812
  %v824 = vpack.c.b16 %v821, %v820
  %v825 = vpack.c.b16 %v823, %v822
  %v829 = vsel %vm109, %v815, 0
  %831 = vmatpush.bf16.msra.mxu0 0
  %832 = vmatpush.bf16.msra.mxu0 0
  %833 = vmatpush.bf16.msra.mxu0 0
  %834 = vmatpush.bf16.msra.mxu0 0
  %835 = vmatpush.bf16.msra.mxu0 0
  %836 = vmatpush.bf16.msra.mxu0 0
  %837 = vmatpush.bf16.msra.mxu0 %v825
  %838 = vmatpush.bf16.msra.mxu0 %v824
  %839 = vmatmul.bf16.gmra.mxu0 %v829
  %v840 = vpop.f32.mrf.mxu0
  %v841 = vadd.f32 0.0, %v840
  %v842 = vpop.f32.mrf.mxu0
  %843 = vdwg.mxu0
  %v844 = vadd.f32 %v813, %v841
  %v845 = vxor.u32 %v844, 2147483648
  %v846 = vmul.f32 %v845, 1.442695
  %v847 = vpow.pop %v846
  %v848 = vadd.f32 %v847, 1.0
  %v849 = vrcp.pop %v848
  %v850 = vmul.f32 %v848, %v849
  %v851 = vsub.f32 1.0, %v850
  %v852 = vmul.f32 %v849, %v851
  %v853 = vadd.f32 %v849, %v852
  %vm854 = vweird.f32 %v848
  %vm855 = vweird.f32 %v849
  %vm856 = vmor %vm854, %vm855
  %v857 = vsel %vm856, %v849, %v853
  %v858 = vand.u32 2147483647, %v848
  %vm859 = vcmp.eq.f32.partialorder %v858, 8.507059e+37
  %v860 = vand.u32 %v848, 2147483648
  %v861 = vor.u32 1.1754944e-38, %v860
  %v862 = vsel %vm859, %v861, %v857
  %v863 = vmul.f32 1.0, %v862
  %v864 = vtanh.pop %v844
  %v865 = vld [vmem:[#allocation5] sm:$0xff]
  %867 = vrot.lane.b32.xlu0 %v865, 32
  %v868 = vpop.permute.xlu0 %867
  %v870 = vmul.f32 %v863, %v868
  %872 = vrot.lane.b32.xlu0 %v864, 64
  %v873 = vpop.permute.xlu0 %872
  %v875 = vmul.f32 %v863, %v873
  %877 = vrot.lane.b32.xlu0 %v875, 32
  %v878 = vpop.permute.xlu0 %877
  %v880 = vadd.f32 %v870, %v878
  %v881 = vtanh.pop %v880
  %883 = vrot.lane.b32.xlu0 %v881, 64
  %v884 = vpop.permute.xlu0 %883
  %v886 = vmul.f32 %v863, %v884
  %888 = vrot.lane.b32.xlu0 %v880, 96
  %v889 = vpop.permute.xlu0 %888
  %891 = vst.msk [vmem:[#allocation5] sm:$0xff] %vm109, %v889
  %893 = vrot.lane.b32.xlu0 %v886, 32
  %v894 = vpop.permute.xlu0 %893
  %896 = vst.msk [vmem:[#allocation4] sm:$0xff] %vm109, %v894
  %897 = vst.msk [vmem:[#allocation3] sm:$0xff] %vm109, %v894
  %v898 = vld [vmem:[%s201] sm:$0xff]
  %v899 = vld [vmem:[#allocation4] sm:$0xff]
  %v900 = vpack.c.bf16 %v899, %v899
  %v902 = vsel %vm109, %v900, 0
  %904 = vmatpush.bf16.msra.mxu0 0
  %905 = vmatpush.bf16.msra.mxu0 0
  %906 = vmatpush.bf16.msra.mxu0 0
  %907 = vmatpush.bf16.msra.mxu0 0
  %908 = vmatpush.bf16.msra.mxu0 0
  %909 = vmatpush.bf16.msra.mxu0 0
  %910 = vmatpush.bf16.msra.mxu0 %v825
  %911 = vmatpush.bf16.msra.mxu0 %v824
  %912 = vmatmul.bf16.gmra.mxu0 %v902
  %v913 = vpop.f32.mrf.mxu0
  %v914 = vadd.f32 0.0, %v913
  %v915 = vpop.f32.mrf.mxu0
  %916 = vdwg.mxu0
  %v917 = vadd.f32 %v898, %v914
  %v918 = vxor.u32 %v917, 2147483648
  %v919 = vmul.f32 %v918, 1.442695
  %v920 = vpow.pop %v919
  %v921 = vadd.f32 %v920, 1.0
  %v922 = vrcp.pop %v921
  %v923 = vmul.f32 %v921, %v922
  %v924 = vsub.f32 1.0, %v923
  %v925 = vmul.f32 %v922, %v924
  %v926 = vadd.f32 %v922, %v925
  %vm927 = vweird.f32 %v921
  %vm928 = vweird.f32 %v922
  %vm929 = vmor %vm927, %vm928
  %v930 = vsel %vm929, %v922, %v926
  %v931 = vand.u32 2147483647, %v921
  %vm932 = vcmp.eq.f32.partialorder %v931, 8.507059e+37
  %v933 = vand.u32 %v921, 2147483648
  %v934 = vor.u32 1.1754944e-38, %v933
  %v935 = vsel %vm932, %v934, %v930
  %v936 = vmul.f32 1.0, %v935
  %v937 = vtanh.pop %v917
  %v938 = vld [vmem:[#allocation5] sm:$0xff]
  %940 = vrot.lane.b32.xlu0 %v938, 32
  %v941 = vpop.permute.xlu0 %940
  %v943 = vmul.f32 %v936, %v941
  %945 = vrot.lane.b32.xlu0 %v937, 64
  %v946 = vpop.permute.xlu0 %945
  %v948 = vmul.f32 %v936, %v946
  %950 = vrot.lane.b32.xlu0 %v948, 32
  %v951 = vpop.permute.xlu0 %950
  %v953 = vadd.f32 %v943, %v951
  %v954 = vtanh.pop %v953
  %956 = vrot.lane.b32.xlu0 %v954, 64
  %v957 = vpop.permute.xlu0 %956
  %v959 = vmul.f32 %v936, %v957
  %961 = vrot.lane.b32.xlu0 %v953, 96
  %v962 = vpop.permute.xlu0 %961
  %964 = vst.msk [vmem:[#allocation5] sm:$0xff] %vm109, %v962
  %966 = vrot.lane.b32.xlu0 %v959, 32
  %v967 = vpop.permute.xlu0 %966
  %969 = vst.msk [vmem:[#allocation4] sm:$0xff] %vm109, %v967
  %970 = vst.msk [vmem:[%s274] sm:$0xff] %vm109, %v967
  %v971 = vld [vmem:[%s276] sm:$0xff]
  %v972 = vld [vmem:[#allocation4] sm:$0xff]
  %v973 = vpack.c.bf16 %v972, %v972
  %v975 = vsel %vm109, %v973, 0
  %977 = vmatpush.bf16.msra.mxu0 0
  %978 = vmatpush.bf16.msra.mxu0 0
  %979 = vmatpush.bf16.msra.mxu0 0
  %980 = vmatpush.bf16.msra.mxu0 0
  %981 = vmatpush.bf16.msra.mxu0 0
  %982 = vmatpush.bf16.msra.mxu0 0
  %983 = vmatpush.bf16.msra.mxu0 %v825
  %984 = vmatpush.bf16.msra.mxu0 %v824
  %985 = vmatmul.bf16.gmra.mxu0 %v975
  %v986 = vpop.f32.mrf.mxu0
  %v987 = vadd.f32 0.0, %v986
  %v988 = vpop.f32.mrf.mxu0
  %989 = vdwg.mxu0
  %v990 = vadd.f32 %v971, %v987
  %v991 = vxor.u32 %v990, 2147483648
  %v992 = vmul.f32 %v991, 1.442695
  %v993 = vpow.pop %v992
  %v994 = vadd.f32 %v993, 1.0
  %v995 = vrcp.pop %v994
  %v996 = vmul.f32 %v994, %v995
  %v997 = vsub.f32 1.0, %v996
  %v998 = vmul.f32 %v995, %v997
  %v999 = vadd.f32 %v995, %v998
  %vm1000 = vweird.f32 %v994
  %vm1001 = vweird.f32 %v995
  %vm1002 = vmor %vm1000, %vm1001
  %v1003 = vsel %vm1002, %v995, %v999
  %v1004 = vand.u32 2147483647, %v994
  %vm1005 = vcmp.eq.f32.partialorder %v1004, 8.507059e+37
  %v1006 = vand.u32 %v994, 2147483648
  %v1007 = vor.u32 1.1754944e-38, %v1006
  %v1008 = vsel %vm1005, %v1007, %v1003
  %v1009 = vmul.f32 1.0, %v1008
  %v1010 = vtanh.pop %v990
  %v1011 = vld [vmem:[#allocation5] sm:$0xff]
  %1013 = vrot.lane.b32.xlu0 %v1011, 32
  %v1014 = vpop.permute.xlu0 %1013
  %v1016 = vmul.f32 %v1009, %v1014
  %1018 = vrot.lane.b32.xlu0 %v1010, 64
  %v1019 = vpop.permute.xlu0 %1018
  %v1021 = vmul.f32 %v1009, %v1019
  %1023 = vrot.lane.b32.xlu0 %v1021, 32
  %v1024 = vpop.permute.xlu0 %1023
  %v1026 = vadd.f32 %v1016, %v1024
  %v1027 = vtanh.pop %v1026
  %1029 = vrot.lane.b32.xlu0 %v1027, 64
  %v1030 = vpop.permute.xlu0 %1029
  %v1032 = vmul.f32 %v1009, %v1030
  %1034 = vrot.lane.b32.xlu0 %v1026, 96
  %v1035 = vpop.permute.xlu0 %1034
  %1037 = vst.msk [vmem:[#allocation5] sm:$0xff] %vm109, %v1035
  %1039 = vrot.lane.b32.xlu0 %v1032, 32
  %v1040 = vpop.permute.xlu0 %1039
  %1042 = vst.msk [vmem:[#allocation4] sm:$0xff] %vm109, %v1040
  %1043 = vst.msk [vmem:[%s349] sm:$0xff] %vm109, %v1040
  %v1044 = vld [vmem:[%s351] sm:$0xff]
  %v1045 = vld [vmem:[#allocation4] sm:$0xff]
  %v1046 = vpack.c.bf16 %v1045, %v1045
  %v1048 = vsel %vm109, %v1046, 0
  %1050 = vmatpush.bf16.msra.mxu0 0
  %1051 = vmatpush.bf16.msra.mxu0 0
  %1052 = vmatpush.bf16.msra.mxu0 0
  %1053 = vmatpush.bf16.msra.mxu0 0
  %1054 = vmatpush.bf16.msra.mxu0 0
  %1055 = vmatpush.bf16.msra.mxu0 0
  %1056 = vmatpush.bf16.msra.mxu0 %v825
  %1057 = vmatpush.bf16.msra.mxu0 %v824
  %1058 = vmatmul.bf16.gmra.mxu0 %v1048
  %v1059 = vpop.f32.mrf.mxu0
  %v1060 = vadd.f32 0.0, %v1059
  %v1061 = vpop.f32.mrf.mxu0
  %1062 = vdwg.mxu0
  %v1063 = vadd.f32 %v1044, %v1060
  %v1064 = vxor.u32 %v1063, 2147483648
  %v1065 = vmul.f32 %v1064, 1.442695
  %v1066 = vpow.pop %v1065
  %v1067 = vadd.f32 %v1066, 1.0
  %v1068 = vrcp.pop %v1067
  %v1069 = vmul.f32 %v1067, %v1068
  %v1070 = vsub.f32 1.0, %v1069
  %v1071 = vmul.f32 %v1068, %v1070
  %v1072 = vadd.f32 %v1068, %v1071
  %vm1073 = vweird.f32 %v1067
  %vm1074 = vweird.f32 %v1068
  %vm1075 = vmor %vm1073, %vm1074
  %v1076 = vsel %vm1075, %v1068, %v1072
  %v1077 = vand.u32 2147483647, %v1067
  %vm1078 = vcmp.eq.f32.partialorder %v1077, 8.507059e+37
  %v1079 = vand.u32 %v1067, 2147483648
  %v1080 = vor.u32 1.1754944e-38, %v1079
  %v1081 = vsel %vm1078, %v1080, %v1076
  %v1082 = vmul.f32 1.0, %v1081
  %v1083 = vtanh.pop %v1063
  %v1084 = vld [vmem:[#allocation5] sm:$0xff]
  %1086 = vrot.lane.b32.xlu0 %v1084, 32
  %v1087 = vpop.permute.xlu0 %1086
  %v1089 = vmul.f32 %v1082, %v1087
  %1091 = vrot.lane.b32.xlu0 %v1083, 64
  %v1092 = vpop.permute.xlu0 %1091
  %v1094 = vmul.f32 %v1082, %v1092
  %1096 = vrot.lane.b32.xlu0 %v1094, 32
  %v1097 = vpop.permute.xlu0 %1096
  %v1099 = vadd.f32 %v1089, %v1097
  %v1100 = vtanh.pop %v1099
  %1102 = vrot.lane.b32.xlu0 %v1100, 64
  %v1103 = vpop.permute.xlu0 %1102
  %v1105 = vmul.f32 %v1082, %v1103
  %1107 = vrot.lane.b32.xlu0 %v1099, 96
  %v1108 = vpop.permute.xlu0 %1107
  %1110 = vst.msk [vmem:[#allocation5] sm:$0xff] %vm109, %v1108
  %1112 = vrot.lane.b32.xlu0 %v1105, 32
  %v1113 = vpop.permute.xlu0 %1112
  %1115 = vst.msk [vmem:[#allocation4] sm:$0xff] %vm109, %v1113
  %1116 = vst.msk [vmem:[%s424] sm:$0xff] %vm109, %v1113
  %v1117 = vld [vmem:[%s426] sm:$0xff]
  %v1118 = vld [vmem:[#allocation4] sm:$0xff]
  %v1119 = vpack.c.bf16 %v1118, %v1118
  %v1121 = vsel %vm109, %v1119, 0
  %1123 = vmatpush.bf16.msra.mxu0 0
  %1124 = vmatpush.bf16.msra.mxu0 0
  %1125 = vmatpush.bf16.msra.mxu0 0
  %1126 = vmatpush.bf16.msra.mxu0 0
  %1127 = vmatpush.bf16.msra.mxu0 0
  %1128 = vmatpush.bf16.msra.mxu0 0
  %1129 = vmatpush.bf16.msra.mxu0 %v825
  %1130 = vmatpush.bf16.msra.mxu0 %v824
  %1131 = vmatmul.bf16.gmra.mxu0 %v1121
  %v1132 = vpop.f32.mrf.mxu0
  %v1133 = vadd.f32 0.0, %v1132
  %v1134 = vpop.f32.mrf.mxu0
  %1135 = vdwg.mxu0
  %v1136 = vadd.f32 %v1117, %v1133
  %v1137 = vxor.u32 %v1136, 2147483648
  %v1138 = vmul.f32 %v1137, 1.442695
  %v1139 = vpow.pop %v1138
  %v1140 = vadd.f32 %v1139, 1.0
  %v1141 = vrcp.pop %v1140
  %v1142 = vmul.f32 %v1140, %v1141
  %v1143 = vsub.f32 1.0, %v1142
  %v1144 = vmul.f32 %v1141, %v1143
  %v1145 = vadd.f32 %v1141, %v1144
  %vm1146 = vweird.f32 %v1140
  %vm1147 = vweird.f32 %v1141
  %vm1148 = vmor %vm1146, %vm1147
  %v1149 = vsel %vm1148, %v1141, %v1145
  %v1150 = vand.u32 2147483647, %v1140
  %vm1151 = vcmp.eq.f32.partialorder %v1150, 8.507059e+37
  %v1152 = vand.u32 %v1140, 2147483648
  %v1153 = vor.u32 1.1754944e-38, %v1152
  %v1154 = vsel %vm1151, %v1153, %v1149
  %v1155 = vmul.f32 1.0, %v1154
  %v1156 = vtanh.pop %v1136
  %v1157 = vld [vmem:[#allocation5] sm:$0xff]
  %1159 = vrot.lane.b32.xlu0 %v1157, 32
  %v1160 = vpop.permute.xlu0 %1159
  %v1162 = vmul.f32 %v1155, %v1160
  %1164 = vrot.lane.b32.xlu0 %v1156, 64
  %v1165 = vpop.permute.xlu0 %1164
  %v1167 = vmul.f32 %v1155, %v1165
  %1169 = vrot.lane.b32.xlu0 %v1167, 32
  %v1170 = vpop.permute.xlu0 %1169
  %v1172 = vadd.f32 %v1162, %v1170
  %v1173 = vtanh.pop %v1172
  %1175 = vrot.lane.b32.xlu0 %v1173, 64
  %v1176 = vpop.permute.xlu0 %1175
  %v1178 = vmul.f32 %v1155, %v1176
  %1180 = vrot.lane.b32.xlu0 %v1172, 96
  %v1181 = vpop.permute.xlu0 %1180
  %1183 = vst.msk [vmem:[#allocation5] sm:$0xff] %vm109, %v1181
  %1185 = vrot.lane.b32.xlu0 %v1178, 32
  %v1186 = vpop.permute.xlu0 %1185
  %1188 = vst.msk [vmem:[#allocation4] sm:$0xff] %vm109, %v1186
  %1189 = vst.msk [vmem:[%s499] sm:$0xff] %vm109, %v1186
  %v1190 = vld [vmem:[%s501] sm:$0xff]
  %v1191 = vld [vmem:[#allocation4] sm:$0xff]
  %v1192 = vpack.c.bf16 %v1191, %v1191
  %v1194 = vsel %vm109, %v1192, 0
  %1196 = vmatpush.bf16.msra.mxu0 0
  %1197 = vmatpush.bf16.msra.mxu0 0
  %1198 = vmatpush.bf16.msra.mxu0 0
  %1199 = vmatpush.bf16.msra.mxu0 0
  %1200 = vmatpush.bf16.msra.mxu0 0
  %1201 = vmatpush.bf16.msra.mxu0 0
  %1202 = vmatpush.bf16.msra.mxu0 %v825
  %1203 = vmatpush.bf16.msra.mxu0 %v824
  %1204 = vmatmul.bf16.gmra.mxu0 %v1194
  %v1205 = vpop.f32.mrf.mxu0
  %v1206 = vadd.f32 0.0, %v1205
  %v1207 = vpop.f32.mrf.mxu0
  %1208 = vdwg.mxu0
  %v1209 = vadd.f32 %v1190, %v1206
  %v1210 = vxor.u32 %v1209, 2147483648
  %v1211 = vmul.f32 %v1210, 1.442695
  %v1212 = vpow.pop %v1211
  %v1213 = vadd.f32 %v1212, 1.0
  %v1214 = vrcp.pop %v1213
  %v1215 = vmul.f32 %v1213, %v1214
  %v1216 = vsub.f32 1.0, %v1215
  %v1217 = vmul.f32 %v1214, %v1216
  %v1218 = vadd.f32 %v1214, %v1217
  %vm1219 = vweird.f32 %v1213
  %vm1220 = vweird.f32 %v1214
  %vm1221 = vmor %vm1219, %vm1220
  %v1222 = vsel %vm1221, %v1214, %v1218
  %v1223 = vand.u32 2147483647, %v1213
  %vm1224 = vcmp.eq.f32.partialorder %v1223, 8.507059e+37
  %v1225 = vand.u32 %v1213, 2147483648
  %v1226 = vor.u32 1.1754944e-38, %v1225
  %v1227 = vsel %vm1224, %v1226, %v1222
  %v1228 = vmul.f32 1.0, %v1227
  %v1229 = vtanh.pop %v1209
  %v1230 = vld [vmem:[#allocation5] sm:$0xff]
  %1232 = vrot.lane.b32.xlu0 %v1230, 32
  %v1233 = vpop.permute.xlu0 %1232
  %v1235 = vmul.f32 %v1228, %v1233
  %1237 = vrot.lane.b32.xlu0 %v1229, 64
  %v1238 = vpop.permute.xlu0 %1237
  %v1240 = vmul.f32 %v1228, %v1238
  %1242 = vrot.lane.b32.xlu0 %v1240, 32
  %v1243 = vpop.permute.xlu0 %1242
  %v1245 = vadd.f32 %v1235, %v1243
  %v1246 = vtanh.pop %v1245
  %1248 = vrot.lane.b32.xlu0 %v1246, 64
  %v1249 = vpop.permute.xlu0 %1248
  %v1251 = vmul.f32 %v1228, %v1249
  %1253 = vrot.lane.b32.xlu0 %v1245, 96
  %v1254 = vpop.permute.xlu0 %1253
  %1256 = vst.msk [vmem:[#allocation5] sm:$0xff] %vm109, %v1254
  %1258 = vrot.lane.b32.xlu0 %v1251, 32
  %v1259 = vpop.permute.xlu0 %1258
  %1261 = vst.msk [vmem:[#allocation4] sm:$0xff] %vm109, %v1259
  %1262 = vst.msk [vmem:[%s574] sm:$0xff] %vm109, %v1259
  %v1263 = vld [vmem:[%s576] sm:$0xff]
  %v1264 = vld [vmem:[#allocation4] sm:$0xff]
  %v1265 = vpack.c.bf16 %v1264, %v1264
  %v1267 = vsel %vm109, %v1265, 0
  %1269 = vmatpush.bf16.msra.mxu0 0
  %1270 = vmatpush.bf16.msra.mxu0 0
  %1271 = vmatpush.bf16.msra.mxu0 0
  %1272 = vmatpush.bf16.msra.mxu0 0
  %1273 = vmatpush.bf16.msra.mxu0 0
  %1274 = vmatpush.bf16.msra.mxu0 0
  %1275 = vmatpush.bf16.msra.mxu0 %v825
  %1276 = vmatpush.bf16.msra.mxu0 %v824
  %1277 = vmatmul.bf16.gmra.mxu0 %v1267
  %v1278 = vpop.f32.mrf.mxu0
  %v1279 = vadd.f32 0.0, %v1278
  %v1280 = vpop.f32.mrf.mxu0
  %1281 = vdwg.mxu0
  %v1282 = vadd.f32 %v1263, %v1279
  %v1283 = vxor.u32 %v1282, 2147483648
  %v1284 = vmul.f32 %v1283, 1.442695
  %v1285 = vpow.pop %v1284
  %v1286 = vadd.f32 %v1285, 1.0
  %v1287 = vrcp.pop %v1286
  %v1288 = vmul.f32 %v1286, %v1287
  %v1289 = vsub.f32 1.0, %v1288
  %v1290 = vmul.f32 %v1287, %v1289
  %v1291 = vadd.f32 %v1287, %v1290
  %vm1292 = vweird.f32 %v1286
  %vm1293 = vweird.f32 %v1287
  %vm1294 = vmor %vm1292, %vm1293
  %v1295 = vsel %vm1294, %v1287, %v1291
  %v1296 = vand.u32 2147483647, %v1286
  %vm1297 = vcmp.eq.f32.partialorder %v1296, 8.507059e+37
  %v1298 = vand.u32 %v1286, 2147483648
  %v1299 = vor.u32 1.1754944e-38, %v1298
  %v1300 = vsel %vm1297, %v1299, %v1295
  %v1301 = vmul.f32 1.0, %v1300
  %v1302 = vtanh.pop %v1282
  %v1303 = vld [vmem:[#allocation5] sm:$0xff]
  %1305 = vrot.lane.b32.xlu0 %v1303, 32
  %v1306 = vpop.permute.xlu0 %1305
  %v1308 = vmul.f32 %v1301, %v1306
  %1310 = vrot.lane.b32.xlu0 %v1302, 64
  %v1311 = vpop.permute.xlu0 %1310
  %v1313 = vmul.f32 %v1301, %v1311
  %1315 = vrot.lane.b32.xlu0 %v1313, 32
  %v1316 = vpop.permute.xlu0 %1315
  %v1318 = vadd.f32 %v1308, %v1316
  %v1319 = vtanh.pop %v1318
  %1321 = vrot.lane.b32.xlu0 %v1319, 64
  %v1322 = vpop.permute.xlu0 %1321
  %v1324 = vmul.f32 %v1301, %v1322
  %1326 = vrot.lane.b32.xlu0 %v1318, 96
  %v1327 = vpop.permute.xlu0 %1326
  %1329 = vst.msk [vmem:[#allocation5] sm:$0xff] %vm109, %v1327
  %1331 = vrot.lane.b32.xlu0 %v1324, 32
  %v1332 = vpop.permute.xlu0 %1331
  %1334 = vst.msk [vmem:[#allocation4] sm:$0xff] %vm109, %v1332
  %1335 = vst.msk [vmem:[%s649] sm:$0xff] %vm109, %v1332
  %v1336 = vld [vmem:[%s651] sm:$0xff]
  %v1337 = vld [vmem:[#allocation4] sm:$0xff]
  %v1338 = vpack.c.bf16 %v1337, %v1337
  %v1340 = vsel %vm109, %v1338, 0
  %1342 = vmatpush.bf16.msra.mxu0 0
  %1343 = vmatpush.bf16.msra.mxu0 0
  %1344 = vmatpush.bf16.msra.mxu0 0
  %1345 = vmatpush.bf16.msra.mxu0 0
  %1346 = vmatpush.bf16.msra.mxu0 0
  %1347 = vmatpush.bf16.msra.mxu0 0
  %1348 = vmatpush.bf16.msra.mxu0 %v825
  %1349 = vmatpush.bf16.msra.mxu0 %v824
  %1350 = vmatmul.bf16.gmra.mxu0 %v1340
  %v1351 = vpop.f32.mrf.mxu0
  %v1352 = vadd.f32 0.0, %v1351
  %v1353 = vpop.f32.mrf.mxu0
  %1354 = vdwg.mxu0
  %v1355 = vadd.f32 %v1336, %v1352
  %v1356 = vxor.u32 %v1355, 2147483648
  %v1357 = vmul.f32 %v1356, 1.442695
  %v1358 = vpow.pop %v1357
  %v1359 = vadd.f32 %v1358, 1.0
  %v1360 = vrcp.pop %v1359
  %v1361 = vmul.f32 %v1359, %v1360
  %v1362 = vsub.f32 1.0, %v1361
  %v1363 = vmul.f32 %v1360, %v1362
  %v1364 = vadd.f32 %v1360, %v1363
  %vm1365 = vweird.f32 %v1359
  %vm1366 = vweird.f32 %v1360
  %vm1367 = vmor %vm1365, %vm1366
  %v1368 = vsel %vm1367, %v1360, %v1364
  %v1369 = vand.u32 2147483647, %v1359
  %vm1370 = vcmp.eq.f32.partialorder %v1369, 8.507059e+37
  %v1371 = vand.u32 %v1359, 2147483648
  %v1372 = vor.u32 1.1754944e-38, %v1371
  %v1373 = vsel %vm1370, %v1372, %v1368
  %v1374 = vmul.f32 1.0, %v1373
  %v1375 = vtanh.pop %v1355
  %v1376 = vld [vmem:[#allocation5] sm:$0xff]
  %1378 = vrot.lane.b32.xlu0 %v1376, 32
  %v1379 = vpop.permute.xlu0 %1378
  %v1381 = vmul.f32 %v1374, %v1379
  %1383 = vrot.lane.b32.xlu0 %v1375, 64
  %v1384 = vpop.permute.xlu0 %1383
  %v1386 = vmul.f32 %v1374, %v1384
  %1388 = vrot.lane.b32.xlu0 %v1386, 32
  %v1389 = vpop.permute.xlu0 %1388
  %v1391 = vadd.f32 %v1381, %v1389
  %v1392 = vtanh.pop %v1391
  %1394 = vrot.lane.b32.xlu0 %v1392, 64
  %v1395 = vpop.permute.xlu0 %1394
  %v1397 = vmul.f32 %v1374, %v1395
  %1399 = vrot.lane.b32.xlu0 %v1391, 96
  %v1400 = vpop.permute.xlu0 %1399
  %1402 = vst.msk [vmem:[#allocation5] sm:$0xff] %vm109, %v1400
  %1404 = vrot.lane.b32.xlu0 %v1397, 32
  %v1405 = vpop.permute.xlu0 %1404
  %1407 = vst.msk [vmem:[#allocation4] sm:$0xff] %vm109, %v1405
  %1408 = vst.msk [vmem:[%s724] sm:$0xff] %vm109, %v1405
  %v1409 = vld [vmem:[#allocation3] sm:$0xff]
  %v1410 = vld [vmem:[#allocation3 + $0x8] sm:$0xff]
  %v1411 = vld [vmem:[#allocation3 + $0x10] sm:$0xff]
  %v1412 = vld [vmem:[#allocation3 + $0x18] sm:$0xff]
  %v1413 = vld [vmem:[#allocation3 + $0x20] sm:$0xff]
  %v1414 = vld [vmem:[#allocation3 + $0x28] sm:$0xff]
  %v1415 = vld [vmem:[#allocation3 + $0x30] sm:$0xff]
  %v1416 = vld [vmem:[#allocation3 + $0x38] sm:$0xff]
  %v1417 = vld [vmem:[%s7] sm:$0x1]
  %v1419 = vperm.slane %v1417, 0
  %v1421 = vmul.f32 %v1409, %v1419
  %v1422 = vmul.f32 %v1410, %v1419
  %v1423 = vmul.f32 %v1411, %v1419
  %v1424 = vmul.f32 %v1412, %v1419
  %v1425 = vmul.f32 %v1413, %v1419
  %v1426 = vmul.f32 %v1414, %v1419
  %v1427 = vmul.f32 %v1415, %v1419
  %v1428 = vmul.f32 %v1416, %v1419
  %v1429 = vsel %vm109, %v1421, 0.0
  %1430 = vadd.xlane.f32.xlu0 %v1429
  %v1431 = vpop.xlane.xlu0 %1430
  %v1432 = vsel %vm109, %v1422, 0.0
  %1433 = vadd.xlane.f32.xlu0 %v1432
  %v1434 = vpop.xlane.xlu0 %1433
  %v1435 = vsel %vm109, %v1423, 0.0
  %1436 = vadd.xlane.f32.xlu0 %v1435
  %v1437 = vpop.xlane.xlu0 %1436
  %v1438 = vsel %vm109, %v1424, 0.0
  %1439 = vadd.xlane.f32.xlu0 %v1438
  %v1440 = vpop.xlane.xlu0 %1439
  %v1441 = vsel %vm109, %v1425, 0.0
  %1442 = vadd.xlane.f32.xlu0 %v1441
  %v1443 = vpop.xlane.xlu0 %1442
  %v1444 = vsel %vm109, %v1426, 0.0
  %1445 = vadd.xlane.f32.xlu0 %v1444
  %v1446 = vpop.xlane.xlu0 %1445
  %v1447 = vsel %vm109, %v1427, 0.0
  %1448 = vadd.xlane.f32.xlu0 %v1447
  %v1449 = vpop.xlane.xlu0 %1448
  %v1450 = vsel %vm109, %v1428, 0.0
  %1451 = vadd.xlane.f32.xlu0 %v1450
  %v1452 = vpop.xlane.xlu0 %1451
  %v1453 = vld [vmem:[#allocation6] sm:$0x1]
  %v1455 = vperm.slane %v1453, 0
  %1456 = vset.pattern.permute.xlu0 0
  %1457 = vperm.xlu0 %1456, %v1455
  %v1458 = vpop.permute.xlu0 %1457
  %v1460 = vadd.f32 %v1431, %v1458
  %v1461 = vadd.f32 %v1434, %v1458
  %v1462 = vadd.f32 %v1437, %v1458
  %v1463 = vadd.f32 %v1440, %v1458
  %v1464 = vadd.f32 %v1443, %v1458
  %v1465 = vadd.f32 %v1446, %v1458
  %v1466 = vadd.f32 %v1449, %v1458
  %v1467 = vadd.f32 %v1452, %v1458
  %v1468 = vxor.u32 %v1460, 2147483648
  %v1469 = vxor.u32 %v1461, 2147483648
  %v1470 = vxor.u32 %v1462, 2147483648
  %v1471 = vxor.u32 %v1463, 2147483648
  %v1472 = vxor.u32 %v1464, 2147483648
  %v1473 = vxor.u32 %v1465, 2147483648
  %v1474 = vxor.u32 %v1466, 2147483648
  %v1475 = vxor.u32 %v1467, 2147483648
  %v1476 = vmul.f32 %v1468, 1.442695
  %v1477 = vpow.pop %v1476
  %v1478 = vmul.f32 %v1469, 1.442695
  %v1479 = vpow.pop %v1478
  %v1480 = vmul.f32 %v1470, 1.442695
  %v1481 = vpow.pop %v1480
  %v1482 = vmul.f32 %v1471, 1.442695
  %v1483 = vpow.pop %v1482
  %v1484 = vmul.f32 %v1472, 1.442695
  %v1485 = vpow.pop %v1484
  %v1486 = vmul.f32 %v1473, 1.442695
  %v1487 = vpow.pop %v1486
  %v1488 = vmul.f32 %v1474, 1.442695
  %v1489 = vpow.pop %v1488
  %v1490 = vmul.f32 %v1475, 1.442695
  %v1491 = vpow.pop %v1490
  %v1492 = vadd.f32 %v1477, 1.0
  %v1493 = vadd.f32 %v1479, 1.0
  %v1494 = vadd.f32 %v1481, 1.0
  %v1495 = vadd.f32 %v1483, 1.0
  %v1496 = vadd.f32 %v1485, 1.0
  %v1497 = vadd.f32 %v1487, 1.0
  %v1498 = vadd.f32 %v1489, 1.0
  %v1499 = vadd.f32 %v1491, 1.0
  %v1500 = vrcp.pop %v1492
  %v1501 = vmul.f32 %v1492, %v1500
  %v1502 = vsub.f32 1.0, %v1501
  %v1503 = vmul.f32 %v1500, %v1502
  %v1504 = vadd.f32 %v1500, %v1503
  %vm1505 = vweird.f32 %v1492
  %vm1506 = vweird.f32 %v1500
  %vm1507 = vmor %vm1505, %vm1506
  %v1508 = vsel %vm1507, %v1500, %v1504
  %v1509 = vand.u32 2147483647, %v1492
  %vm1510 = vcmp.eq.f32.partialorder %v1509, 8.507059e+37
  %v1511 = vand.u32 %v1492, 2147483648
  %v1512 = vor.u32 1.1754944e-38, %v1511
  %v1513 = vsel %vm1510, %v1512, %v1508
  %v1514 = vmul.f32 1.0, %v1513
  %v1515 = vrcp.pop %v1493
  %v1516 = vmul.f32 %v1493, %v1515
  %v1517 = vsub.f32 1.0, %v1516
  %v1518 = vmul.f32 %v1515, %v1517
  %v1519 = vadd.f32 %v1515, %v1518
  %vm1520 = vweird.f32 %v1493
  %vm1521 = vweird.f32 %v1515
  %vm1522 = vmor %vm1520, %vm1521
  %v1523 = vsel %vm1522, %v1515, %v1519
  %v1524 = vand.u32 2147483647, %v1493
  %vm1525 = vcmp.eq.f32.partialorder %v1524, 8.507059e+37
  %v1526 = vand.u32 %v1493, 2147483648
  %v1527 = vor.u32 1.1754944e-38, %v1526
  %v1528 = vsel %vm1525, %v1527, %v1523
  %v1529 = vmul.f32 1.0, %v1528
  %v1530 = vrcp.pop %v1494
  %v1531 = vmul.f32 %v1494, %v1530
  %v1532 = vsub.f32 1.0, %v1531
  %v1533 = vmul.f32 %v1530, %v1532
  %v1534 = vadd.f32 %v1530, %v1533
  %vm1535 = vweird.f32 %v1494
  %vm1536 = vweird.f32 %v1530
  %vm1537 = vmor %vm1535, %vm1536
  %v1538 = vsel %vm1537, %v1530, %v1534
  %v1539 = vand.u32 2147483647, %v1494
  %vm1540 = vcmp.eq.f32.partialorder %v1539, 8.507059e+37
  %v1541 = vand.u32 %v1494, 2147483648
  %v1542 = vor.u32 1.1754944e-38, %v1541
  %v1543 = vsel %vm1540, %v1542, %v1538
  %v1544 = vmul.f32 1.0, %v1543
  %v1545 = vrcp.pop %v1495
  %v1546 = vmul.f32 %v1495, %v1545
  %v1547 = vsub.f32 1.0, %v1546
  %v1548 = vmul.f32 %v1545, %v1547
  %v1549 = vadd.f32 %v1545, %v1548
  %vm1550 = vweird.f32 %v1495
  %vm1551 = vweird.f32 %v1545
  %vm1552 = vmor %vm1550, %vm1551
  %v1553 = vsel %vm1552, %v1545, %v1549
  %v1554 = vand.u32 2147483647, %v1495
  %vm1555 = vcmp.eq.f32.partialorder %v1554, 8.507059e+37
  %v1556 = vand.u32 %v1495, 2147483648
  %v1557 = vor.u32 1.1754944e-38, %v1556
  %v1558 = vsel %vm1555, %v1557, %v1553
  %v1559 = vmul.f32 1.0, %v1558
  %v1560 = vrcp.pop %v1496
  %v1561 = vmul.f32 %v1496, %v1560
  %v1562 = vsub.f32 1.0, %v1561
  %v1563 = vmul.f32 %v1560, %v1562
  %v1564 = vadd.f32 %v1560, %v1563
  %vm1565 = vweird.f32 %v1496
  %vm1566 = vweird.f32 %v1560
  %vm1567 = vmor %vm1565, %vm1566
  %v1568 = vsel %vm1567, %v1560, %v1564
  %v1569 = vand.u32 2147483647, %v1496
  %vm1570 = vcmp.eq.f32.partialorder %v1569, 8.507059e+37
  %v1571 = vand.u32 %v1496, 2147483648
  %v1572 = vor.u32 1.1754944e-38, %v1571
  %v1573 = vsel %vm1570, %v1572, %v1568
  %v1574 = vmul.f32 1.0, %v1573
  %v1575 = vrcp.pop %v1497
  %v1576 = vmul.f32 %v1497, %v1575
  %v1577 = vsub.f32 1.0, %v1576
  %v1578 = vmul.f32 %v1575, %v1577
  %v1579 = vadd.f32 %v1575, %v1578
  %vm1580 = vweird.f32 %v1497
  %vm1581 = vweird.f32 %v1575
  %vm1582 = vmor %vm1580, %vm1581
  %v1583 = vsel %vm1582, %v1575, %v1579
  %v1584 = vand.u32 2147483647, %v1497
  %vm1585 = vcmp.eq.f32.partialorder %v1584, 8.507059e+37
  %v1586 = vand.u32 %v1497, 2147483648
  %v1587 = vor.u32 1.1754944e-38, %v1586
  %v1588 = vsel %vm1585, %v1587, %v1583
  %v1589 = vmul.f32 1.0, %v1588
  %v1590 = vrcp.pop %v1498
  %v1591 = vmul.f32 %v1498, %v1590
  %v1592 = vsub.f32 1.0, %v1591
  %v1593 = vmul.f32 %v1590, %v1592
  %v1594 = vadd.f32 %v1590, %v1593
  %vm1595 = vweird.f32 %v1498
  %vm1596 = vweird.f32 %v1590
  %vm1597 = vmor %vm1595, %vm1596
  %v1598 = vsel %vm1597, %v1590, %v1594
  %v1599 = vand.u32 2147483647, %v1498
  %vm1600 = vcmp.eq.f32.partialorder %v1599, 8.507059e+37
  %v1601 = vand.u32 %v1498, 2147483648
  %v1602 = vor.u32 1.1754944e-38, %v1601
  %v1603 = vsel %vm1600, %v1602, %v1598
  %v1604 = vmul.f32 1.0, %v1603
  %v1605 = vrcp.pop %v1499
  %v1606 = vmul.f32 %v1499, %v1605
  %v1607 = vsub.f32 1.0, %v1606
  %v1608 = vmul.f32 %v1605, %v1607
  %v1609 = vadd.f32 %v1605, %v1608
  %vm1610 = vweird.f32 %v1499
  %vm1611 = vweird.f32 %v1605
  %vm1612 = vmor %vm1610, %vm1611
  %v1613 = vsel %vm1612, %v1605, %v1609
  %v1614 = vand.u32 2147483647, %v1499
  %vm1615 = vcmp.eq.f32.partialorder %v1614, 8.507059e+37
  %v1616 = vand.u32 %v1499, 2147483648
  %v1617 = vor.u32 1.1754944e-38, %v1616
  %v1618 = vsel %vm1615, %v1617, %v1613
  %v1619 = vmul.f32 1.0, %v1618
  %v1628 = vlaneseq
  %v1629 = vand.u32 %v1628, 127
  %v1630 = vperm.slane %v1514, %v1629
  %v1631 = vperm.slane %v1529, %v1629
  %v1632 = vperm.slane %v1544, %v1629
  %v1633 = vperm.slane %v1559, %v1629
  %v1634 = vperm.slane %v1574, %v1629
  %v1635 = vperm.slane %v1589, %v1629
  %v1636 = vperm.slane %v1604, %v1629
  %v1637 = vperm.slane %v1619, %v1629
  %vm1638 = vcmask 1041409
  %v1639 = vsel %vm1638, %v1631, %v1630
  %vm1640 = vcmask 1042434
  %v1641 = vsel %vm1640, %v1632, %v1639
  %vm1642 = vcmask 1043459
  %v1643 = vsel %vm1642, %v1633, %v1641
  %vm1644 = vcmask 1044484
  %v1645 = vsel %vm1644, %v1634, %v1643
  %vm1646 = vcmask 1045509
  %v1647 = vsel %vm1646, %v1635, %v1645
  %vm1648 = vcmask 1046534
  %v1649 = vsel %vm1648, %v1636, %v1647
  %vm1650 = vcmask 1047559
  %v1651 = vsel %vm1650, %v1637, %v1649
  %vm1653 = vcmask 64512
  %1654 = vst.msk [vmem:[%s9] sm:$0xff] %vm1653, %v1651
  // Predicated region
  $region38: #{discriminator_forward.1} parent=0 // pred_check
    _
  $region39: #{discriminator_forward.1} parent=0 // pred_check_branch
    %1656 = sbr.rel (0) target = $region41
  $region40: #{discriminator_forward.1} parent=0 // pred_region
    _
  $region41: #{discriminator_forward.1} parent=0 // pred_fallthru
    _
  // Predicated region
  $region42: #{discriminator_forward.1} parent=0 // pred_check
    _
  $region43: #{discriminator_forward.1} parent=0 // pred_check_branch
    %1658 = sbr.rel (0) target = $region45
  $region44: #{discriminator_forward.1} parent=0 // pred_region
    _
  $region45: #{discriminator_forward.1} parent=0 // pred_fallthru
    _

</llo_original>
